<compile_context>
chip_gen: v5e
topology: v5e:2x2
jax: 0.10.0
libtpu: 0.0.40
codegen_flags: <defaults>
</compile_context>

<pallas_src>
import functools
import math

import jax
import jax.numpy as jnp
from jax.experimental import pallas as pl
from jax.experimental.pallas import tpu as pltpu

_F32 = jnp.float32
_BF16 = jnp.bfloat16
_VMEM_LIMIT = 48 * 1024 * 1024          # fits v7x (64 MiB) with headroom
N_HEAD = 8


# ---------------------------------------------------------------------------
# Pallas kernels
# ---------------------------------------------------------------------------
def _linear_kernel(*refs, act, has_res):
    """(M,K)bf16 @ (K,bn)bf16 -> f32 acc; + bias [+ act] [+ residual]; store bf16."""
    if has_res:
        x_ref, w_ref, b_ref, r_ref, o_ref = refs
    else:
        x_ref, w_ref, b_ref, o_ref = refs
        r_ref = None
    y = jnp.dot(x_ref[...], w_ref[...], preferred_element_type=jnp.float32)
    y = y + b_ref[...]
    if act == "silu":
        y = y * jax.nn.sigmoid(y)
    if has_res:
        y = y + r_ref[...].astype(jnp.float32)
    o_ref[...] = y.astype(o_ref.dtype)


def _conv_kernel(*refs, KW, Ho, Wo, act, has_res):
    """One KxK conv as a tap-reduction: grid axis = tap, f32 VMEM accumulator,
    bias/act/residual fused into the final store."""
    if has_res:
        x_ref, w_ref, b_ref, r_ref, o_ref, acc_ref = refs
    else:
        x_ref, w_ref, b_ref, o_ref, acc_ref = refs
        r_ref = None
    t = pl.program_id(0)

    @pl.when(t == 0)
    def _init():
        acc_ref[...] = jnp.zeros_like(acc_ref)

    B = x_ref.shape[0]
    Cin = x_ref.shape[-1]
    dy = t // KW
    dx = t % KW
    xs = x_ref[:, pl.ds(dy, Ho), pl.ds(dx, Wo), :]          # shifted tap window
    x2 = xs.reshape(B * Ho * Wo, Cin)
    acc_ref[...] += jnp.dot(x2, w_ref[0], preferred_element_type=jnp.float32)

    @pl.when(t == pl.num_programs(0) - 1)
    def _finish():
        y = acc_ref[...] + b_ref[...]
        if act == "silu":
            y = y * jax.nn.sigmoid(y)
        y = y.reshape(o_ref.shape)
        if has_res:
            y = y + r_ref[...].astype(jnp.float32)
        o_ref[...] = y.astype(o_ref.dtype)


def _group_norm_kernel(x_ref, g_ref, b_ref, o_ref, *, G, eps, silu):
    """One sample per grid step; group stats via tiny one-hot matmuls (lane-dense)."""
    x = x_ref[0].astype(jnp.float32)                        # (HW, C)
    HW, C = x.shape
    Cg = C // G
    inv_n = 1.0 / float(Cg * HW)
    oh_cg = (jax.lax.broadcasted_iota(jnp.int32, (C, G), 0) // Cg
             == jax.lax.broadcasted_iota(jnp.int32, (C, G), 1)).astype(jnp.float32)
    oh_gc = (jax.lax.broadcasted_iota(jnp.int32, (G, C), 1) // Cg
             == jax.lax.broadcasted_iota(jnp.int32, (G, C), 0)).astype(jnp.float32)
    s = jnp.sum(x, axis=0, keepdims=True)                   # (1, C)
    mean_g = jnp.dot(s, oh_cg, preferred_element_type=jnp.float32) * inv_n   # (1, G)
    mean_c = jnp.dot(mean_g, oh_gc, preferred_element_type=jnp.float32)      # (1, C)
    d = x - mean_c
    ss = jnp.sum(d * d, axis=0, keepdims=True)              # (1, C)
    var_g = jnp.dot(ss, oh_cg, preferred_element_type=jnp.float32) * inv_n   # (1, G)
    inv_c = jnp.dot(jax.lax.rsqrt(var_g + eps), oh_gc,
                    preferred_element_type=jnp.float32)     # (1, C)
    y = d * inv_c * g_ref[...] + b_ref[...]
    if silu:
        y = y * jax.nn.sigmoid(y)
    o_ref[0] = y.astype(o_ref.dtype)


def _layer_norm_kernel(x_ref, g_ref, b_ref, o_ref, *, eps):
    x = x_ref[...].astype(jnp.float32)
    mean = jnp.mean(x, axis=-1, keepdims=True)
    d = x - mean
    var = jnp.mean(d * d, axis=-1, keepdims=True)
    y = d * jax.lax.rsqrt(var + eps) * g_ref[...] + b_ref[...]
    o_ref[...] = y.astype(o_ref.dtype)


def _attend(q, k, v, scale, out_dtype):
    """softmax((q k^T) * scale) @ v for one head; f32 softmax, bf16 MXU inputs."""
    s = jax.lax.dot_general(q, k, (((1,), (1,)), ((), ())),
                            preferred_element_type=jnp.float32) * scale
    m = jnp.max(s, axis=-1, keepdims=True)
    e = jnp.exp(s - m)
    p = e / jnp.sum(e, axis=-1, keepdims=True)
    o = jnp.dot(p.astype(v.dtype), v, preferred_element_type=jnp.float32)
    return o.astype(out_dtype)


def _self_attn_kernel(qkv_ref, o_ref, *, n_heads):
    C = qkv_ref.shape[-1] // 3
    d = C // n_heads
    scale = 1.0 / math.sqrt(d)
    for h in range(n_heads):
        q = qkv_ref[0, :, h * d:(h + 1) * d]
        k = qkv_ref[0, :, C + h * d:C + (h + 1) * d]
        v = qkv_ref[0, :, 2 * C + h * d:2 * C + (h + 1) * d]
        o_ref[0, :, h * d:(h + 1) * d] = _attend(q, k, v, scale, o_ref.dtype)


def _cross_attn_kernel(q_ref, k_ref, v_ref, o_ref, *, n_heads):
    C = q_ref.shape[-1]
    d = C // n_heads
    scale = 1.0 / math.sqrt(d)
    for h in range(n_heads):
        q = q_ref[0, :, h * d:(h + 1) * d]
        k = k_ref[0, :, h * d:(h + 1) * d]
        v = v_ref[0, :, h * d:(h + 1) * d]
        o_ref[0, :, h * d:(h + 1) * d] = _attend(q, k, v, scale, o_ref.dtype)


# ---------------------------------------------------------------------------
# Pallas-call wrappers
# ---------------------------------------------------------------------------
def _pick_bn(N, K):
    """Largest 128-multiple N-tile whose bf16 weight block stays ~<= 4 MiB."""
    limit = max(128, (2 * 1024 * 1024) // max(K, 1))
    best = None
    for bn in range(128, N + 1, 128):
        if N % bn == 0 and bn <= limit:
            best = bn
    return best if best is not None else N


@functools.partial(jax.jit, static_argnames=("act",))
def linear(x, p, act=None, res=None):
    """Fused linear: bias (+ SiLU) (+ residual) in the epilogue; single M block so
    each weight tile is streamed from HBM exactly once."""
    shp = x.shape
    K = shp[-1]
    w, b = p["w"], p["b"]
    N = w.shape[1]
    x2 = x.reshape(-1, K)
    M = x2.shape[0]
    bn = _pick_bn(N, K)
    b2 = b.reshape(1, N).astype(jnp.float32)
    has_res = res is not None
    in_specs = [
        pl.BlockSpec((M, K), lambda j: (0, 0)),
        pl.BlockSpec((K, bn), lambda j: (0, j)),
        pl.BlockSpec((1, bn), lambda j: (0, j)),
    ]
    inputs = [x2, w, b2]
    if has_res:
        in_specs.append(pl.BlockSpec((M, bn), lambda j: (0, j)))
        inputs.append(res.reshape(-1, N))
    out = pl.pallas_call(
        functools.partial(_linear_kernel, act=act, has_res=has_res),
        out_shape=jax.ShapeDtypeStruct((M, N), x.dtype),
        grid=(N // bn,),
        in_specs=in_specs,
        out_specs=pl.BlockSpec((M, bn), lambda j: (0, j)),
        compiler_params=pltpu.CompilerParams(
            dimension_semantics=("parallel",),
            vmem_limit_bytes=_VMEM_LIMIT),
    )(*inputs)
    return out.reshape(shp[:-1] + (N,))


@functools.partial(jax.jit, static_argnames=("stride", "act"))
def conv2d(x, p, stride=1, act=None, res=None, extra_bias=None):
    """PyTorch Conv2d (padding=(k-1)//2) on channel-last data, one pallas_call."""
    w = p["w"]                                       # (k*k, Cin, Cout) bf16
    KK, Cin, Cout = w.shape
    k = int(round(math.sqrt(KK)))
    pad = (k - 1) // 2
    B, H, W_, _ = x.shape
    b = p["b"].astype(jnp.float32)
    if extra_bias is not None:                       # time-embedding bias folded in
        b = b + extra_bias.astype(jnp.float32)
    b = b.reshape(1, Cout)
    xp = jnp.pad(x, ((0, 0), (pad, pad), (pad, pad), (0, 0))) if pad else x
    Hp, Wp = H + 2 * pad, W_ + 2 * pad
    Ho, Wo = Hp - k + 1, Wp - k + 1                  # stride-1 output extent
    has_res = res is not None
    in_specs = [
        pl.BlockSpec((B, Hp, Wp, Cin), lambda t: (0, 0, 0, 0)),
        pl.BlockSpec((1, Cin, Cout), lambda t: (t, 0, 0)),
        pl.BlockSpec((1, Cout), lambda t: (0, 0)),
    ]
    inputs = [xp, w, b]
    if has_res:
        in_specs.append(pl.BlockSpec((B, Ho, Wo, Cout), lambda t: (0, 0, 0, 0)))
        inputs.append(res)
    out = pl.pallas_call(
        functools.partial(_conv_kernel, KW=k, Ho=Ho, Wo=Wo, act=act,
                          has_res=has_res),
        out_shape=jax.ShapeDtypeStruct((B, Ho, Wo, Cout), x.dtype),
        grid=(KK,),
        in_specs=in_specs,
        out_specs=pl.BlockSpec((B, Ho, Wo, Cout), lambda t: (0, 0, 0, 0)),
        scratch_shapes=[pltpu.VMEM((B * Ho * Wo, Cout), jnp.float32)],
        compiler_params=pltpu.CompilerParams(
            dimension_semantics=("arbitrary",),
            vmem_limit_bytes=_VMEM_LIMIT),
    )(*inputs)
    if stride > 1:
        # TODO(synk): the 3 downsampling convs compute at stride 1 and subsample
        # here; an in-kernel strided pl.ds read would skip the extra taps.
        out = out[:, ::stride, ::stride, :]
    return out


@functools.partial(jax.jit, static_argnames=("eps", "silu"))
def group_norm(x, p, eps=1e-5, silu=False):
    B, H, W_, C = x.shape
    HW = H * W_
    xr = x.reshape(B, HW, C)
    out = pl.pallas_call(
        functools.partial(_group_norm_kernel, G=32, eps=eps, silu=silu),
        out_shape=jax.ShapeDtypeStruct((B, HW, C), x.dtype),
        grid=(B,),
        in_specs=[
            pl.BlockSpec((1, HW, C), lambda b: (b, 0, 0)),
            pl.BlockSpec((1, C), lambda b: (0, 0)),
            pl.BlockSpec((1, C), lambda b: (0, 0)),
        ],
        out_specs=pl.BlockSpec((1, HW, C), lambda b: (b, 0, 0)),
        compiler_params=pltpu.CompilerParams(
            dimension_semantics=("parallel",),
            vmem_limit_bytes=_VMEM_LIMIT),
    )(xr, p["g"].reshape(1, C), p["b"].reshape(1, C))
    return out.reshape(B, H, W_, C)


@jax.jit
def layer_norm(x, p):
    shp = x.shape
    C = shp[-1]
    x2 = x.reshape(-1, C)
    R = x2.shape[0]
    bm = 256 if R % 256 == 0 else R
    out = pl.pallas_call(
        functools.partial(_layer_norm_kernel, eps=1e-5),
        out_shape=jax.ShapeDtypeStruct((R, C), x.dtype),
        grid=(R // bm,),
        in_specs=[
            pl.BlockSpec((bm, C), lambda i: (i, 0)),
            pl.BlockSpec((1, C), lambda i: (0, 0)),
            pl.BlockSpec((1, C), lambda i: (0, 0)),
        ],
        out_specs=pl.BlockSpec((bm, C), lambda i: (i, 0)),
        compiler_params=pltpu.CompilerParams(
            dimension_semantics=("parallel",),
            vmem_limit_bytes=_VMEM_LIMIT),
    )(x2, p["g"].reshape(1, C), p["b"].reshape(1, C))
    return out.reshape(shp)


@functools.partial(jax.jit, static_argnames=("n_heads",))
def self_attention(qkv, n_heads):
    """Fused multi-head softmax(QK^T)V from a packed (B,S,3C) QKV tensor."""
    B, S, C3 = qkv.shape
    C = C3 // 3
    return pl.pallas_call(
        functools.partial(_self_attn_kernel, n_heads=n_heads),
        out_shape=jax.ShapeDtypeStruct((B, S, C), qkv.dtype),
        grid=(B,),
        in_specs=[pl.BlockSpec((1, S, C3), lambda b: (b, 0, 0))],
        out_specs=pl.BlockSpec((1, S, C), lambda b: (b, 0, 0)),
        compiler_params=pltpu.CompilerParams(
            dimension_semantics=("parallel",),
            vmem_limit_bytes=_VMEM_LIMIT),
    )(qkv)


@functools.partial(jax.jit, static_argnames=("n_heads",))
def cross_attention(q, k, v, n_heads):
    B, Sq, C = q.shape
    Skv = k.shape[1]
    return pl.pallas_call(
        functools.partial(_cross_attn_kernel, n_heads=n_heads),
        out_shape=jax.ShapeDtypeStruct((B, Sq, C), q.dtype),
        grid=(B,),
        in_specs=[
            pl.BlockSpec((1, Sq, C), lambda b: (b, 0, 0)),
            pl.BlockSpec((1, Skv, C), lambda b: (b, 0, 0)),
            pl.BlockSpec((1, Skv, C), lambda b: (b, 0, 0)),
        ],
        out_specs=pl.BlockSpec((1, Sq, C), lambda b: (b, 0, 0)),
        compiler_params=pltpu.CompilerParams(
            dimension_semantics=("parallel",),
            vmem_limit_bytes=_VMEM_LIMIT),
    )(q, k, v)


@jax.jit
def _geglu_gate(hg):
    # TODO(synk): exact-erf GELU gate kept in XLA (f32) rather than inside the
    # linear kernel, to avoid relying on in-kernel erf lowering.
    val, gate = jnp.split(hg, 2, axis=-1)
    return (val.astype(jnp.float32)
            * jax.nn.gelu(gate.astype(jnp.float32), approximate=False)).astype(hg.dtype)


# ---------------------------------------------------------------------------
# Model blocks (channel-last (B, H, W, C) activations, bf16)
# ---------------------------------------------------------------------------
def residual_block(x, t_emb, p):
    residue = x
    h = group_norm(x, p["gn1"], eps=1e-5, silu=True)          # GroupNorm + SiLU fused
    t = linear(t_emb, p["time"])                              # (1, Cout)
    # time bias and the post-add SiLU are folded into conv1's epilogue
    h = conv2d(h, p["conv1"], act="silu", extra_bias=t[0])
    # Reference: `merged - self.groupnorm_merged(merged)` is a discarded no-op,
    # so groupnorm_merged is intentionally NOT applied here (reproduced literally).
    if "res" in p:
        residue = conv2d(residue, p["res"])
    return conv2d(h, p["conv2"], res=residue)                 # conv + residual fused


def attention_block(x, context, p):
    # TODO(synk): reference reads `input.shape` (python builtin); using x.shape.
    B, H, W_, C = x.shape
    residue_long = x
    h = group_norm(x, p["gn"], eps=1e-6, silu=False)
    h = conv2d(h, p["conv_in"])
    h = h.reshape(B, H * W_, C)                               # channel-last: no transpose
    res_s = h
    hn = layer_norm(h, p["ln1"])
    qkv = linear(hn, p["attn1"]["in_proj"])
    a = self_attention(qkv, n_heads=N_HEAD)
    h = linear(a, p["attn1"]["out_proj"], res=res_s)          # out_proj + residual fused
    res_s = h
    hn = layer_norm(h, p["ln2"])
    q = linear(hn, p["attn2"]["q"])
    kk = linear(context, p["attn2"]["k"])
    vv = linear(context, p["attn2"]["v"])
    a = cross_attention(q, kk, vv, n_heads=N_HEAD)
    h = linear(a, p["attn2"]["out_proj"], res=res_s)
    res_s = h
    hn = layer_norm(h, p["ln3"])
    hg = linear(hn, p["geglu1"])
    h = _geglu_gate(hg)
    h = linear(h, p["geglu2"], res=res_s)
    h = h.reshape(B, H, W_, C)
    return conv2d(h, p["conv_out"], res=residue_long)         # conv + long residual fused


def upsample(x, p):
    # TODO(synk): nearest-2x kept as an XLA broadcast; could be folded into the
    # following conv's input staging for a further (small) HBM saving.
    B, H, W_, C = x.shape
    x = jnp.broadcast_to(x[:, :, None, :, None, :], (B, H, 2, W_, 2, C))
    x = x.reshape(B, 2 * H, 2 * W_, C)
    return conv2d(x, p["conv"])


def switch_sequential(layers, x, context, time_emb):
    for kind, p in layers:
        if kind == "attn":
            x = attention_block(x, context, p)
        elif kind == "res":
            x = residual_block(x, time_emb, p)
        elif kind == "conv":
            x = conv2d(x, p)
        elif kind == "conv_s2":
            x = conv2d(x, p, stride=2)
        elif kind == "up":
            x = upsample(x, p)
    return x


# ---------------------------------------------------------------------------
# Deterministic parameter construction (synthetic init; no checkpoint loading).
# Weights are pre-laid-out once at init: linear (K,N) bf16, conv (k*k,Cin,Cout)
# bf16, biases/norm params f32. Same-shape weights share one tensor.
# ---------------------------------------------------------------------------
_KEY = jax.random.PRNGKey(0)
_COUNTER = [0]
_WCACHE = {}


def _next_key():
    _COUNTER[0] += 1
    return jax.random.fold_in(_KEY, _COUNTER[0])


def _w(shape, fan_in):
    ck = (shape, fan_in)
    if ck not in _WCACHE:
        _WCACHE[ck] = (jax.random.normal(_next_key(), shape, _F32)
                       / math.sqrt(fan_in)).astype(_BF16)
    return _WCACHE[ck]


def make_linear(din, dout, bias=True):
    del bias  # bias=False layers use a zero bias (numerically identical)
    return {"w": _w((din, dout), din), "b": jnp.zeros((dout,), _F32)}


def make_conv(cin, cout, k):
    return {"w": _w((k * k, cin, cout), cin * k * k), "b": jnp.zeros((cout,), _F32)}


def make_norm(c):
    return {"g": jnp.ones((c,), _F32), "b": jnp.zeros((c,), _F32)}


def make_res(cin, cout, n_time=1280):
    p = {"gn1": make_norm(cin),
         "conv1": make_conv(cin, cout, 3),
         "time": make_linear(n_time, cout),
         "gn_merged": make_norm(cout),      # created for parity, unused (see residual_block)
         "conv2": make_conv(cout, cout, 3)}
    if cin != cout:
        p["res"] = make_conv(cin, cout, 1)
    return p


def make_attn(n_head, n_embd, d_context=768):
    c = n_head * n_embd
    return {"gn": make_norm(c),
            "conv_in": make_conv(c, c, 1),
            "ln1": make_norm(c),
            "attn1": {"in_proj": make_linear(c, 3 * c, bias=False),
                      "out_proj": make_linear(c, c, bias=True)},
            "ln2": make_norm(c),
            "attn2": {"q": make_linear(c, c, bias=False),
                      "k": make_linear(d_context, c, bias=False),
                      "v": make_linear(d_context, c, bias=False),
                      "out_proj": make_linear(c, c, bias=True)},
            "ln3": make_norm(c),
            "geglu1": make_linear(c, 4 * c * 2, bias=True),
            "geglu2": make_linear(4 * c, c, bias=True),
            "conv_out": make_conv(c, c, 1)}


def make_unet():
    enc = [
        [("conv", make_conv(4, 320, 3))],
        # TODO(synk): reference uses UNET_AttentionBlock(8, 320) here (2560 channels) on a
        # 320-channel stream; using (8, 40) -> 320 channels as intended.
        [("res", make_res(320, 320)), ("attn", make_attn(8, 40))],
        # TODO(synk): reference lists 11 encoder stages but 12 decoders (pop from an empty
        # skip list); the missing second (Res(320,320), Attn(8,40)) stage is restored.
        [("res", make_res(320, 320)), ("attn", make_attn(8, 40))],
        [("conv_s2", make_conv(320, 320, 3))],
        [("res", make_res(320, 640)), ("attn", make_attn(8, 80))],
        [("res", make_res(640, 640)), ("attn", make_attn(8, 80))],
        [("conv_s2", make_conv(640, 640, 3))],
        [("res", make_res(640, 1280)), ("attn", make_attn(8, 160))],
        [("res", make_res(1280, 1280)), ("attn", make_attn(8, 160))],
        [("conv_s2", make_conv(1280, 1280, 3))],
        [("res", make_res(1280, 1280))],
        [("res", make_res(1280, 1280))],
    ]
    bottleneck = [("res", make_res(1280, 1280)),
                  ("attn", make_attn(8, 160)),
                  ("res", make_res(1280, 1280))]
    dec = [
        [("res", make_res(2560, 1280))],
        [("res", make_res(2560, 1280))],
        [("res", make_res(2560, 1280)), ("up", {"conv": make_conv(1280, 1280, 3)})],
        [("res", make_res(2560, 1280)), ("attn", make_attn(8, 160))],
        [("res", make_res(2560, 1280)), ("attn", make_attn(8, 160))],
        [("res", make_res(1920, 1280)), ("attn", make_attn(8, 160)),
         ("up", {"conv": make_conv(1280, 1280, 3)})],
        [("res", make_res(1920, 640)), ("attn", make_attn(8, 80))],
        [("res", make_res(1280, 640)), ("attn", make_attn(8, 80))],
        [("res", make_res(960, 640)), ("attn", make_attn(8, 80)),
         ("up", {"conv": make_conv(640, 640, 3)})],
        [("res", make_res(960, 320)), ("attn", make_attn(8, 40))],
        # TODO(synk): reference uses UNET_AttentionBlock(8, 80) (640 channels) on a
        # 320-channel stream; using (8, 40) as intended.
        [("res", make_res(640, 320)), ("attn", make_attn(8, 40))],
        [("res", make_res(640, 320)), ("attn", make_attn(8, 40))],
    ]
    return {"enc": enc, "bottleneck": bottleneck, "dec": dec}


def make_diffusion():
    return {"time_embedding": {"l1": make_linear(320, 1280),
                               "l2": make_linear(1280, 1280)},
            "unet": make_unet(),
            "final": {"gn": make_norm(320), "conv": make_conv(320, 4, 3)}}


# ---------------------------------------------------------------------------
# Forward passes
# ---------------------------------------------------------------------------
def time_embedding(t, p):
    h = linear(t, p["l1"], act="silu")                        # Linear + SiLU fused
    return linear(h, p["l2"])


def unet_forward(x, context, time_emb, p):
    skips = []
    for layers in p["enc"]:
        x = switch_sequential(layers, x, context, time_emb)
        skips.append(x)
    x = switch_sequential(p["bottleneck"], x, context, time_emb)
    for layers in p["dec"]:
        x = jnp.concatenate([x, skips.pop()], axis=-1)        # channel-last concat
        x = switch_sequential(layers, x, context, time_emb)
    return x


def diffusion_forward(latent, context, time, p):
    # NCHW -> NHWC once at the module boundary; everything inside is channel-last bf16.
    x = jnp.transpose(latent, (0, 2, 3, 1)).astype(_BF16)
    ctx = context.astype(_BF16)
    t = time_embedding(time.astype(_BF16), p["time_embedding"])
    # TODO(synk): reference has `time - self.unet(...)` (discarded) and returns
    # `self.final(output)` with `output` undefined; implementing the intended
    # dataflow: output = final(unet(latent, context, time_embedding(time))).
    x = unet_forward(x, ctx, t, p["unet"])
    x = group_norm(x, p["final"]["gn"], eps=1e-5, silu=True)  # UNET_OutputLayer
    x = conv2d(x, p["final"]["conv"])
    return jnp.transpose(x, (0, 3, 1, 2)).astype(_F32)


if __name__ == "__main__":
    B, H, W = 2, 16, 16          # latent spatial must be divisible by 8 (3 stride-2 convs)
    seq, d_context = 8, 768
    params = make_diffusion()
    kx, kc, kt = jax.random.split(jax.random.PRNGKey(0), 3)
    latent = jax.random.normal(kx, (B, 4, H, W), _F32)
    context = jax.random.normal(kc, (B, seq, d_context), _F32)
    time = jax.random.normal(kt, (1, 320), _F32)
    out = diffusion_forward(latent, context, time, params)
    jax.block_until_ready(out)
    assert out.shape == (B, 4, H, W)
    print("KERNEL_OK")
</pallas_src>

<mosaic_0001>
module attributes {stable_mosaic.version = 11 : i64} {
  func.func @_linear_kernel(%arg0: i32, %arg1: memref<1x320xbf16, #tpu.memory_space<vmem>>, %arg2: memref<320x1280xbf16, #tpu.memory_space<vmem>>, %arg3: memref<1x1280xf32, #tpu.memory_space<vmem>>, %arg4: memref<1x1280xbf16, #tpu.memory_space<vmem>>) attributes {dimension_semantics = [#tpu.dimension_semantics<parallel>], iteration_bounds = array<i64: 1>, scalar_prefetch = 0 : i64, scratch_operands = 0 : i64, tpu.core_type = #tpu.core_type<tc>, window_params = [{pipeline_mode = #tpu.pipeline_mode<synchronous>, transform_indices = @transform_0, window_bounds = array<i64: 1, 320>}, {transform_indices = @transform_1, window_bounds = array<i64: 320, 1280>}, {transform_indices = @transform_2, window_bounds = array<i64: 1, 1280>}, {transform_indices = @transform_3, window_bounds = array<i64: 1, 1280>}]} {
    %c0 = arith.constant 0 : index
    %c0_0 = arith.constant 0 : index
    %0 = vector.load %arg1[%c0, %c0_0] : memref<1x320xbf16, #tpu.memory_space<vmem>>, vector<1x320xbf16>
    %c0_1 = arith.constant 0 : index
    %c0_2 = arith.constant 0 : index
    %1 = vector.load %arg2[%c0_1, %c0_2] : memref<320x1280xbf16, #tpu.memory_space<vmem>>, vector<320x1280xbf16>
    %cst = arith.constant dense<0.000000e+00> : vector<1x1280xf32>
    %2 = tpu.matmul %0, %1, %cst {dimension_numbers = #tpu.dot_dimension_numbers<[1], [0], [0], [1], [0, 0, 1, 1], [], []>} : vector<1x320xbf16>, vector<320x1280xbf16>, vector<1x1280xf32> -> vector<1x1280xf32>
    %c0_3 = arith.constant 0 : index
    %c0_4 = arith.constant 0 : index
    %3 = vector.load %arg3[%c0_3, %c0_4] : memref<1x1280xf32, #tpu.memory_space<vmem>>, vector<1x1280xf32>
    %4 = arith.addf %2, %3 : vector<1x1280xf32>
    %5 = arith.negf %4 : vector<1x1280xf32>
    %6 = math.exp %5 : vector<1x1280xf32>
    %cst_5 = arith.constant 1.000000e+00 : f32
    %7 = vector.broadcast %cst_5 : f32 to vector<1x1280xf32>
    %8 = arith.addf %7, %6 : vector<1x1280xf32>
    %9 = arith.divf %7, %8 : vector<1x1280xf32>
    %10 = arith.mulf %4, %9 : vector<1x1280xf32>
    %11 = arith.truncf %10 : vector<1x1280xf32> to vector<1x1280xbf16>
    %c0_6 = arith.constant 0 : index
    %c0_7 = arith.constant 0 : index
    %12 = vector.load %arg4[%c0_6, %c0_7] : memref<1x1280xbf16, #tpu.memory_space<vmem>>, vector<1x1280xbf16>
    tpu.vector_store %arg4[%c0_6, %c0_7], %11 {strides = array<i32>} : memref<1x1280xbf16, #tpu.memory_space<vmem>>, vector<1x1280xbf16>,
    return
  }
  func.func @transform_0(%arg0: i32) -> (i32, i32) {
    %c0_i32 = arith.constant 0 : i32
    %c0_i32_0 = arith.constant 0 : i32
    %c0_i32_1 = arith.constant 0 : i32
    return %c0_i32, %c0_i32_0 : i32, i32
  }
  func.func @transform_1(%arg0: i32) -> (i32, i32) {
    %c0_i32 = arith.constant 0 : i32
    %c0_i32_0 = arith.constant 0 : i32
    return %c0_i32, %arg0 : i32, i32
  }
  func.func @transform_2(%arg0: i32) -> (i32, i32) {
    %c0_i32 = arith.constant 0 : i32
    %c0_i32_0 = arith.constant 0 : i32
    return %c0_i32, %arg0 : i32, i32
  }
  func.func @transform_3(%arg0: i32) -> (i32, i32) {
    %c0_i32 = arith.constant 0 : i32
    %c0_i32_0 = arith.constant 0 : i32
    return %c0_i32, %arg0 : i32, i32
  }
}

</mosaic_0001>

<llo_original>
// kernel: linear.1
$region0: #{linear.1}
  #allocation0 [shape = 'u32[]', space=smem, size = 0x4, offset = 0x4, fixed_abs, tag = 'smem constant byte address 0x4 - core index']
  #allocation1 [shape = 'u32[72,128]{1,0:T(1,128)}', space=vmem, size = 0x9000, scoped, tag = 'internal scratch']
  %s0 = inlined_call_operand.vmem [shape: bf16[1,320], index: 0, kind: input, shape index: {}]
  %s1 = inlined_call_operand.hbm [shape: bf16[320,1280], index: 1, kind: input, shape index: {}]
  %s2 = inlined_call_operand.vmem [shape: f32[1,1280], index: 2, kind: input, shape index: {}]
  %s3 = inlined_call_operand.hbm [shape: bf16[1,1280], index: 3, kind: output, shape index: {}]
  %s4 = sld [smem:[#allocation0]]
  $region26: #{linear.1} parent=0
    _
  %s6 = ssub.s32 1, %s4
  %s7 = scalar_select 0, %s6, %s4
  $region1: #{linear.1} parent=0
    #allocation2 [shape = 'u8[819200]{0}', space=vmem, size = 0xc8000, scoped, tag = 'input window, operand 1, single buffered']
    #allocation3 [shape = 's32[1]{0}', space=sflag, size = 0x4, scoped, tag = 'scoped memory for linear.1']
    #allocation4 [shape = 's32[1]{0}', space=sflag, size = 0x4, scoped, tag = 'scoped memory for linear.1']
    #allocation5 [shape = 'u8[5120]{0}', space=vmem, size = 0x1400, scoped, tag = 'output window, operand 0, single buffered']
    %8 = vsyncpa [#allocation3], 0
    %9 = vsyncpa [#allocation4], 0
    // Predicated region
    $region2: #{linear.1} parent=1 // pred_check
      _
    $region3: #{linear.1} parent=1 // pred_check_branch
      %11 = sbr.rel (0) target = $region5
    $region4: #{linear.1} parent=1 // pred_region
      _
    $region5: #{linear.1} parent=1 // pred_fallthru
      _
    // Predicated region
    $region6: #{linear.1} parent=1 // pred_check
      _
    $region7: #{linear.1} parent=1 // pred_check_branch
      %13 = sbr.rel (0) target = $region9
    $region8: #{linear.1} parent=1 // pred_region
      %15 = vsyncadd [#allocation3], 0
      %s16 = sshll.u32 %s1, 4
      %s17 = int_to_ptr.hbm [resolvable:$true] %s16
      %s18 = sshll.u32 [#allocation2], 4
      %s19 = int_to_ptr.vmem [resolvable:$true] %s18
      %24 = dma.hbm_to_vmem [thread:$0]  %s17, 25600, %s19, [#allocation3], 640, 640, 40
    $region9: #{linear.1} parent=1 // pred_fallthru
      _
    // Predicated region
    $region10: #{linear.1} parent=1 // pred_check
      _
    $region11: #{linear.1} parent=1 // pred_check_branch
      %26 = sbr.rel (0) target = $region13
    $region12: #{linear.1} parent=1 // pred_region
      _
    $region13: #{linear.1} parent=1 // pred_fallthru
      _
    // Predicated region
    $region14: #{linear.1} parent=1 // pred_check
      _
    $region15: #{linear.1} parent=1 // pred_check_branch
      %28 = sbr.rel (0) target = $region17
    $region16: #{linear.1} parent=1 // pred_region
      %30 = dma.done [#allocation3], 25600
    $region17: #{linear.1} parent=1 // pred_fallthru
      _
    %v32 = vld [vmem:[%s0] sm:$0x7]
    %v33 = vld [vmem:[#allocation2] sm:$0xff]
    %v34 = vld [vmem:[#allocation2 + $0x8] sm:$0xff]
    %v35 = vld [vmem:[#allocation2 + $0x10] sm:$0xff]
    %v36 = vld [vmem:[#allocation2 + $0x18] sm:$0xff]
    %v37 = vld [vmem:[#allocation2 + $0x20] sm:$0xff]
    %v38 = vld [vmem:[#allocation2 + $0x28] sm:$0xff]
    %v39 = vld [vmem:[#allocation2 + $0x30] sm:$0xff]
    %v40 = vld [vmem:[#allocation2 + $0x38] sm:$0xff]
    %v41 = vld [vmem:[#allocation2 + $0x40] sm:$0xff]
    %v42 = vld [vmem:[#allocation2 + $0x48] sm:$0xff]
    %v43 = vld [vmem:[#allocation2 + $0x50] sm:$0xff]
    %v44 = vld [vmem:[#allocation2 + $0x58] sm:$0xff]
    %v45 = vld [vmem:[#allocation2 + $0x60] sm:$0xff]
    %v46 = vld [vmem:[#allocation2 + $0x68] sm:$0xff]
    %v47 = vld [vmem:[#allocation2 + $0x70] sm:$0xff]
    %v48 = vld [vmem:[#allocation2 + $0x78] sm:$0xff]
    %v49 = vld [vmem:[#allocation2 + $0x80] sm:$0xff]
    %v50 = vld [vmem:[#allocation2 + $0x88] sm:$0xff]
    %v51 = vld [vmem:[#allocation2 + $0x90] sm:$0xff]
    %v52 = vld [vmem:[#allocation2 + $0x98] sm:$0xff]
    %v53 = vld [vmem:[#allocation2 + $0xa0] sm:$0xff]
    %v54 = vld [vmem:[#allocation2 + $0xa8] sm:$0xff]
    %v55 = vld [vmem:[#allocation2 + $0xb0] sm:$0xff]
    %v56 = vld [vmem:[#allocation2 + $0xb8] sm:$0xff]
    %v57 = vld [vmem:[#allocation2 + $0xc0] sm:$0xff]
    %v58 = vld [vmem:[#allocation2 + $0xc8] sm:$0xff]
    %v59 = vld [vmem:[#allocation2 + $0xd0] sm:$0xff]
    %v60 = vld [vmem:[#allocation2 + $0xd8] sm:$0xff]
    %v61 = vld [vmem:[#allocation2 + $0xe0] sm:$0xff]
    %v62 = vld [vmem:[#allocation2 + $0xe8] sm:$0xff]
    %v63 = vld [vmem:[#allocation2 + $0xf0] sm:$0xff]
    %v64 = vld [vmem:[#allocation2 + $0xf8] sm:$0xff]
    %v65 = vld [vmem:[#allocation2 + $0x100] sm:$0xff]
    %v66 = vld [vmem:[#allocation2 + $0x108] sm:$0xff]
    %v67 = vld [vmem:[#allocation2 + $0x110] sm:$0xff]
    %v68 = vld [vmem:[#allocation2 + $0x118] sm:$0xff]
    %v69 = vld [vmem:[#allocation2 + $0x120] sm:$0xff]
    %v70 = vld [vmem:[#allocation2 + $0x128] sm:$0xff]
    %v71 = vld [vmem:[#allocation2 + $0x130] sm:$0xff]
    %v72 = vld [vmem:[#allocation2 + $0x138] sm:$0xff]
    %v73 = vld [vmem:[#allocation2 + $0x140] sm:$0xff]
    %v74 = vld [vmem:[#allocation2 + $0x148] sm:$0xff]
    %v75 = vld [vmem:[#allocation2 + $0x150] sm:$0xff]
    %v76 = vld [vmem:[#allocation2 + $0x158] sm:$0xff]
    %v77 = vld [vmem:[#allocation2 + $0x160] sm:$0xff]
    %v78 = vld [vmem:[#allocation2 + $0x168] sm:$0xff]
    %v79 = vld [vmem:[#allocation2 + $0x170] sm:$0xff]
    %v80 = vld [vmem:[#allocation2 + $0x178] sm:$0xff]
    %v81 = vld [vmem:[#allocation2 + $0x180] sm:$0xff]
    %v82 = vld [vmem:[#allocation2 + $0x188] sm:$0xff]
    %v83 = vld [vmem:[#allocation2 + $0x190] sm:$0xff]
    %v84 = vld [vmem:[#allocation2 + $0x198] sm:$0xff]
    %v85 = vld [vmem:[#allocation2 + $0x1a0] sm:$0xff]
    %v86 = vld [vmem:[#allocation2 + $0x1a8] sm:$0xff]
    %v87 = vld [vmem:[#allocation2 + $0x1b0] sm:$0xff]
    %v88 = vld [vmem:[#allocation2 + $0x1b8] sm:$0xff]
    %v89 = vld [vmem:[#allocation2 + $0x1c0] sm:$0xff]
    %v90 = vld [vmem:[#allocation2 + $0x1c8] sm:$0xff]
    %v91 = vld [vmem:[#allocation2 + $0x1d0] sm:$0xff]
    %v92 = vld [vmem:[#allocation2 + $0x1d8] sm:$0xff]
    %v93 = vld [vmem:[#allocation2 + $0x1e0] sm:$0xff]
    %v94 = vld [vmem:[#allocation2 + $0x1e8] sm:$0xff]
    %v95 = vld [vmem:[#allocation2 + $0x1f0] sm:$0xff]
    %v96 = vld [vmem:[#allocation2 + $0x1f8] sm:$0xff]
    %v97 = vld [vmem:[#allocation2 + $0x200] sm:$0xff]
    %v98 = vld [vmem:[#allocation2 + $0x208] sm:$0xff]
    %v99 = vld [vmem:[#allocation2 + $0x210] sm:$0xff]
    %v100 = vld [vmem:[#allocation2 + $0x218] sm:$0xff]
    %v101 = vld [vmem:[#allocation2 + $0x220] sm:$0xff]
    %v102 = vld [vmem:[#allocation2 + $0x228] sm:$0xff]
    %v103 = vld [vmem:[#allocation2 + $0x230] sm:$0xff]
    %v104 = vld [vmem:[#allocation2 + $0x238] sm:$0xff]
    %v105 = vld [vmem:[#allocation2 + $0x240] sm:$0xff]
    %v106 = vld [vmem:[#allocation2 + $0x248] sm:$0xff]
    %v107 = vld [vmem:[#allocation2 + $0x250] sm:$0xff]
    %v108 = vld [vmem:[#allocation2 + $0x258] sm:$0xff]
    %v109 = vld [vmem:[#allocation2 + $0x260] sm:$0xff]
    %v110 = vld [vmem:[#allocation2 + $0x268] sm:$0xff]
    %v111 = vld [vmem:[#allocation2 + $0x270] sm:$0xff]
    %v112 = vld [vmem:[#allocation2 + $0x278] sm:$0xff]
    %v113 = vld [vmem:[#allocation2 + $0x280] sm:$0xff]
    %v114 = vld [vmem:[#allocation2 + $0x288] sm:$0xff]
    %v115 = vld [vmem:[#allocation2 + $0x290] sm:$0xff]
    %v116 = vld [vmem:[#allocation2 + $0x298] sm:$0xff]
    %v117 = vld [vmem:[#allocation2 + $0x2a0] sm:$0xff]
    %v118 = vld [vmem:[#allocation2 + $0x2a8] sm:$0xff]
    %v119 = vld [vmem:[#allocation2 + $0x2b0] sm:$0xff]
    %v120 = vld [vmem:[#allocation2 + $0x2b8] sm:$0xff]
    %v121 = vld [vmem:[#allocation2 + $0x2c0] sm:$0xff]
    %v122 = vld [vmem:[#allocation2 + $0x2c8] sm:$0xff]
    %v123 = vld [vmem:[#allocation2 + $0x2d0] sm:$0xff]
    %v124 = vld [vmem:[#allocation2 + $0x2d8] sm:$0xff]
    %v125 = vld [vmem:[#allocation2 + $0x2e0] sm:$0xff]
    %v126 = vld [vmem:[#allocation2 + $0x2e8] sm:$0xff]
    %v127 = vld [vmem:[#allocation2 + $0x2f0] sm:$0xff]
    %v128 = vld [vmem:[#allocation2 + $0x2f8] sm:$0xff]
    %v129 = vld [vmem:[#allocation2 + $0x300] sm:$0xff]
    %v130 = vld [vmem:[#allocation2 + $0x308] sm:$0xff]
    %v131 = vld [vmem:[#allocation2 + $0x310] sm:$0xff]
    %v132 = vld [vmem:[#allocation2 + $0x318] sm:$0xff]
    %v133 = vld [vmem:[#allocation2 + $0x320] sm:$0xff]
    %v134 = vld [vmem:[#allocation2 + $0x328] sm:$0xff]
    %v135 = vld [vmem:[#allocation2 + $0x330] sm:$0xff]
    %v136 = vld [vmem:[#allocation2 + $0x338] sm:$0xff]
    %v137 = vld [vmem:[#allocation2 + $0x340] sm:$0xff]
    %v138 = vld [vmem:[#allocation2 + $0x348] sm:$0xff]
    %v139 = vld [vmem:[#allocation2 + $0x350] sm:$0xff]
    %v140 = vld [vmem:[#allocation2 + $0x358] sm:$0xff]
    %v141 = vld [vmem:[#allocation2 + $0x360] sm:$0xff]
    %v142 = vld [vmem:[#allocation2 + $0x368] sm:$0xff]
    %v143 = vld [vmem:[#allocation2 + $0x370] sm:$0xff]
    %v144 = vld [vmem:[#allocation2 + $0x378] sm:$0xff]
    %v145 = vld [vmem:[#allocation2 + $0x380] sm:$0xff]
    %v146 = vld [vmem:[#allocation2 + $0x388] sm:$0xff]
    %v147 = vld [vmem:[#allocation2 + $0x390] sm:$0xff]
    %v148 = vld [vmem:[#allocation2 + $0x398] sm:$0xff]
    %v149 = vld [vmem:[#allocation2 + $0x3a0] sm:$0xff]
    %v150 = vld [vmem:[#allocation2 + $0x3a8] sm:$0xff]
    %v151 = vld [vmem:[#allocation2 + $0x3b0] sm:$0xff]
    %v152 = vld [vmem:[#allocation2 + $0x3b8] sm:$0xff]
    %v153 = vld [vmem:[#allocation2 + $0x3c0] sm:$0xff]
    %v154 = vld [vmem:[#allocation2 + $0x3c8] sm:$0xff]
    %v155 = vld [vmem:[#allocation2 + $0x3d0] sm:$0xff]
    %v156 = vld [vmem:[#allocation2 + $0x3d8] sm:$0xff]
    %v157 = vld [vmem:[#allocation2 + $0x3e0] sm:$0xff]
    %v158 = vld [vmem:[#allocation2 + $0x3e8] sm:$0xff]
    %v159 = vld [vmem:[#allocation2 + $0x3f0] sm:$0xff]
    %v160 = vld [vmem:[#allocation2 + $0x3f8] sm:$0xff]
    %v161 = vld [vmem:[#allocation2 + $0x400] sm:$0xff]
    %v162 = vld [vmem:[#allocation2 + $0x408] sm:$0xff]
    %v163 = vld [vmem:[#allocation2 + $0x410] sm:$0xff]
    %v164 = vld [vmem:[#allocation2 + $0x418] sm:$0xff]
    %v165 = vld [vmem:[#allocation2 + $0x420] sm:$0xff]
    %v166 = vld [vmem:[#allocation2 + $0x428] sm:$0xff]
    %v167 = vld [vmem:[#allocation2 + $0x430] sm:$0xff]
    %v168 = vld [vmem:[#allocation2 + $0x438] sm:$0xff]
    %v169 = vld [vmem:[#allocation2 + $0x440] sm:$0xff]
    %v170 = vld [vmem:[#allocation2 + $0x448] sm:$0xff]
    %v171 = vld [vmem:[#allocation2 + $0x450] sm:$0xff]
    %v172 = vld [vmem:[#allocation2 + $0x458] sm:$0xff]
    %v173 = vld [vmem:[#allocation2 + $0x460] sm:$0xff]
    %v174 = vld [vmem:[#allocation2 + $0x468] sm:$0xff]
    %v175 = vld [vmem:[#allocation2 + $0x470] sm:$0xff]
    %v176 = vld [vmem:[#allocation2 + $0x478] sm:$0xff]
    %v177 = vld [vmem:[#allocation2 + $0x480] sm:$0xff]
    %v178 = vld [vmem:[#allocation2 + $0x488] sm:$0xff]
    %v179 = vld [vmem:[#allocation2 + $0x490] sm:$0xff]
    %v180 = vld [vmem:[#allocation2 + $0x498] sm:$0xff]
    %v181 = vld [vmem:[#allocation2 + $0x4a0] sm:$0xff]
    %v182 = vld [vmem:[#allocation2 + $0x4a8] sm:$0xff]
    %v183 = vld [vmem:[#allocation2 + $0x4b0] sm:$0xff]
    %v184 = vld [vmem:[#allocation2 + $0x4b8] sm:$0xff]
    %v185 = vld [vmem:[#allocation2 + $0x4c0] sm:$0xff]
    %v186 = vld [vmem:[#allocation2 + $0x4c8] sm:$0xff]
    %v187 = vld [vmem:[#allocation2 + $0x4d0] sm:$0xff]
    %v188 = vld [vmem:[#allocation2 + $0x4d8] sm:$0xff]
    %v189 = vld [vmem:[#allocation2 + $0x4e0] sm:$0xff]
    %v190 = vld [vmem:[#allocation2 + $0x4e8] sm:$0xff]
    %v191 = vld [vmem:[#allocation2 + $0x4f0] sm:$0xff]
    %v192 = vld [vmem:[#allocation2 + $0x4f8] sm:$0xff]
    %v193 = vld [vmem:[#allocation2 + $0x500] sm:$0xff]
    %v194 = vld [vmem:[#allocation2 + $0x508] sm:$0xff]
    %v195 = vld [vmem:[#allocation2 + $0x510] sm:$0xff]
    %v196 = vld [vmem:[#allocation2 + $0x518] sm:$0xff]
    %v197 = vld [vmem:[#allocation2 + $0x520] sm:$0xff]
    %v198 = vld [vmem:[#allocation2 + $0x528] sm:$0xff]
    %v199 = vld [vmem:[#allocation2 + $0x530] sm:$0xff]
    %v200 = vld [vmem:[#allocation2 + $0x538] sm:$0xff]
    %v201 = vld [vmem:[#allocation2 + $0x540] sm:$0xff]
    %v202 = vld [vmem:[#allocation2 + $0x548] sm:$0xff]
    %v203 = vld [vmem:[#allocation2 + $0x550] sm:$0xff]
    %v204 = vld [vmem:[#allocation2 + $0x558] sm:$0xff]
    %v205 = vld [vmem:[#allocation2 + $0x560] sm:$0xff]
    %v206 = vld [vmem:[#allocation2 + $0x568] sm:$0xff]
    %v207 = vld [vmem:[#allocation2 + $0x570] sm:$0xff]
    %v208 = vld [vmem:[#allocation2 + $0x578] sm:$0xff]
    %v209 = vld [vmem:[#allocation2 + $0x580] sm:$0xff]
    %v210 = vld [vmem:[#allocation2 + $0x588] sm:$0xff]
    %v211 = vld [vmem:[#allocation2 + $0x590] sm:$0xff]
    %v212 = vld [vmem:[#allocation2 + $0x598] sm:$0xff]
    %v213 = vld [vmem:[#allocation2 + $0x5a0] sm:$0xff]
    %v214 = vld [vmem:[#allocation2 + $0x5a8] sm:$0xff]
    %v215 = vld [vmem:[#allocation2 + $0x5b0] sm:$0xff]
    %v216 = vld [vmem:[#allocation2 + $0x5b8] sm:$0xff]
    %v217 = vld [vmem:[#allocation2 + $0x5c0] sm:$0xff]
    %v218 = vld [vmem:[#allocation2 + $0x5c8] sm:$0xff]
    %v219 = vld [vmem:[#allocation2 + $0x5d0] sm:$0xff]
    %v220 = vld [vmem:[#allocation2 + $0x5d8] sm:$0xff]
    %v221 = vld [vmem:[#allocation2 + $0x5e0] sm:$0xff]
    %v222 = vld [vmem:[#allocation2 + $0x5e8] sm:$0xff]
    %v223 = vld [vmem:[#allocation2 + $0x5f0] sm:$0xff]
    %v224 = vld [vmem:[#allocation2 + $0x5f8] sm:$0xff]
    %v225 = vld [vmem:[#allocation2 + $0x600] sm:$0xff]
    %v226 = vld [vmem:[#allocation2 + $0x608] sm:$0xff]
    %v227 = vld [vmem:[#allocation2 + $0x610] sm:$0xff]
    %v228 = vld [vmem:[#allocation2 + $0x618] sm:$0xff]
    %v229 = vld [vmem:[#allocation2 + $0x620] sm:$0xff]
    %v230 = vld [vmem:[#allocation2 + $0x628] sm:$0xff]
    %v231 = vld [vmem:[#allocation2 + $0x630] sm:$0xff]
    %v232 = vld [vmem:[#allocation2 + $0x638] sm:$0xff]
    %v233 = vld [vmem:[%s2] sm:$0xff]
    %v234 = vld [vmem:[%s2 + $0x8] sm:$0x3]
    %236 = vst [vmem:[#allocation1] ss:$9 sm:$0xff] %v32
    %v237 = vld [vmem:[#allocation1] sm:$0xff]
    %v238 = vld [vmem:[#allocation1 + $0x9] sm:$0xff]
    %v239 = vld [vmem:[#allocation1 + $0x12] sm:$0xff]
    %v442 = vunpack.c.l.b16 %v33
    %v443 = vunpack.c.h.b16 %v33
    %v444 = vunpack.c.l.b16 %v34
    %v445 = vunpack.c.h.b16 %v34
    %v446 = vunpack.c.l.b16 %v35
    %v447 = vunpack.c.h.b16 %v35
    %v448 = vunpack.c.l.b16 %v36
    %v449 = vunpack.c.h.b16 %v36
    %v450 = vunpack.c.l.b16 %v37
    %v451 = vunpack.c.h.b16 %v37
    %v452 = vunpack.c.l.b16 %v38
    %v453 = vunpack.c.h.b16 %v38
    %v454 = vunpack.c.l.b16 %v39
    %v455 = vunpack.c.h.b16 %v39
    %v456 = vunpack.c.l.b16 %v40
    %v457 = vunpack.c.h.b16 %v40
    %v458 = vunpack.c.l.b16 %v41
    %v459 = vunpack.c.h.b16 %v41
    %v460 = vunpack.c.l.b16 %v42
    %v461 = vunpack.c.h.b16 %v42
    %v462 = vunpack.c.l.b16 %v43
    %v463 = vunpack.c.h.b16 %v43
    %v464 = vunpack.c.l.b16 %v44
    %v465 = vunpack.c.h.b16 %v44
    %v466 = vunpack.c.l.b16 %v45
    %v467 = vunpack.c.h.b16 %v45
    %v468 = vunpack.c.l.b16 %v46
    %v469 = vunpack.c.h.b16 %v46
    %v470 = vunpack.c.l.b16 %v47
    %v471 = vunpack.c.h.b16 %v47
    %v472 = vunpack.c.l.b16 %v48
    %v473 = vunpack.c.h.b16 %v48
    %v474 = vunpack.c.l.b16 %v49
    %v475 = vunpack.c.h.b16 %v49
    %v476 = vunpack.c.l.b16 %v50
    %v477 = vunpack.c.h.b16 %v50
    %v478 = vunpack.c.l.b16 %v51
    %v479 = vunpack.c.h.b16 %v51
    %v480 = vunpack.c.l.b16 %v52
    %v481 = vunpack.c.h.b16 %v52
    %v482 = vunpack.c.l.b16 %v53
    %v483 = vunpack.c.h.b16 %v53
    %v484 = vunpack.c.l.b16 %v54
    %v485 = vunpack.c.h.b16 %v54
    %v486 = vunpack.c.l.b16 %v55
    %v487 = vunpack.c.h.b16 %v55
    %v488 = vunpack.c.l.b16 %v56
    %v489 = vunpack.c.h.b16 %v56
    %v490 = vunpack.c.l.b16 %v57
    %v491 = vunpack.c.h.b16 %v57
    %v492 = vunpack.c.l.b16 %v58
    %v493 = vunpack.c.h.b16 %v58
    %v494 = vunpack.c.l.b16 %v59
    %v495 = vunpack.c.h.b16 %v59
    %v496 = vunpack.c.l.b16 %v60
    %v497 = vunpack.c.h.b16 %v60
    %v498 = vunpack.c.l.b16 %v61
    %v499 = vunpack.c.h.b16 %v61
    %v500 = vunpack.c.l.b16 %v62
    %v501 = vunpack.c.h.b16 %v62
    %v502 = vunpack.c.l.b16 %v63
    %v503 = vunpack.c.h.b16 %v63
    %v504 = vunpack.c.l.b16 %v64
    %v505 = vunpack.c.h.b16 %v64
    %v506 = vunpack.c.l.b16 %v65
    %v507 = vunpack.c.h.b16 %v65
    %v508 = vunpack.c.l.b16 %v66
    %v509 = vunpack.c.h.b16 %v66
    %v510 = vunpack.c.l.b16 %v67
    %v511 = vunpack.c.h.b16 %v67
    %v512 = vunpack.c.l.b16 %v68
    %v513 = vunpack.c.h.b16 %v68
    %v514 = vunpack.c.l.b16 %v69
    %v515 = vunpack.c.h.b16 %v69
    %v516 = vunpack.c.l.b16 %v70
    %v517 = vunpack.c.h.b16 %v70
    %v518 = vunpack.c.l.b16 %v71
    %v519 = vunpack.c.h.b16 %v71
    %v520 = vunpack.c.l.b16 %v72
    %v521 = vunpack.c.h.b16 %v72
    %v522 = vunpack.c.l.b16 %v73
    %v523 = vunpack.c.h.b16 %v73
    %v524 = vunpack.c.l.b16 %v74
    %v525 = vunpack.c.h.b16 %v74
    %v526 = vunpack.c.l.b16 %v75
    %v527 = vunpack.c.h.b16 %v75
    %v528 = vunpack.c.l.b16 %v76
    %v529 = vunpack.c.h.b16 %v76
    %v530 = vunpack.c.l.b16 %v77
    %v531 = vunpack.c.h.b16 %v77
    %v532 = vunpack.c.l.b16 %v78
    %v533 = vunpack.c.h.b16 %v78
    %v534 = vunpack.c.l.b16 %v79
    %v535 = vunpack.c.h.b16 %v79
    %v536 = vunpack.c.l.b16 %v80
    %v537 = vunpack.c.h.b16 %v80
    %v538 = vunpack.c.l.b16 %v81
    %v539 = vunpack.c.h.b16 %v81
    %v540 = vunpack.c.l.b16 %v82
    %v541 = vunpack.c.h.b16 %v82
    %v542 = vunpack.c.l.b16 %v83
    %v543 = vunpack.c.h.b16 %v83
    %v544 = vunpack.c.l.b16 %v84
    %v545 = vunpack.c.h.b16 %v84
    %v546 = vunpack.c.l.b16 %v85
    %v547 = vunpack.c.h.b16 %v85
    %v548 = vunpack.c.l.b16 %v86
    %v549 = vunpack.c.h.b16 %v86
    %v550 = vunpack.c.l.b16 %v87
    %v551 = vunpack.c.h.b16 %v87
    %v552 = vunpack.c.l.b16 %v88
    %v553 = vunpack.c.h.b16 %v88
    %v554 = vunpack.c.l.b16 %v89
    %v555 = vunpack.c.h.b16 %v89
    %v556 = vunpack.c.l.b16 %v90
    %v557 = vunpack.c.h.b16 %v90
    %v558 = vunpack.c.l.b16 %v91
    %v559 = vunpack.c.h.b16 %v91
    %v560 = vunpack.c.l.b16 %v92
    %v561 = vunpack.c.h.b16 %v92
    %v562 = vunpack.c.l.b16 %v93
    %v563 = vunpack.c.h.b16 %v93
    %v564 = vunpack.c.l.b16 %v94
    %v565 = vunpack.c.h.b16 %v94
    %v566 = vunpack.c.l.b16 %v95
    %v567 = vunpack.c.h.b16 %v95
    %v568 = vunpack.c.l.b16 %v96
    %v569 = vunpack.c.h.b16 %v96
    %v570 = vunpack.c.l.b16 %v97
    %v571 = vunpack.c.h.b16 %v97
    %v572 = vunpack.c.l.b16 %v98
    %v573 = vunpack.c.h.b16 %v98
    %v574 = vunpack.c.l.b16 %v99
    %v575 = vunpack.c.h.b16 %v99
    %v576 = vunpack.c.l.b16 %v100
    %v577 = vunpack.c.h.b16 %v100
    %v578 = vunpack.c.l.b16 %v101
    %v579 = vunpack.c.h.b16 %v101
    %v580 = vunpack.c.l.b16 %v102
    %v581 = vunpack.c.h.b16 %v102
    %v582 = vunpack.c.l.b16 %v103
    %v583 = vunpack.c.h.b16 %v103
    %v584 = vunpack.c.l.b16 %v104
    %v585 = vunpack.c.h.b16 %v104
    %v586 = vunpack.c.l.b16 %v105
    %v587 = vunpack.c.h.b16 %v105
    %v588 = vunpack.c.l.b16 %v106
    %v589 = vunpack.c.h.b16 %v106
    %v590 = vunpack.c.l.b16 %v107
    %v591 = vunpack.c.h.b16 %v107
    %v592 = vunpack.c.l.b16 %v108
    %v593 = vunpack.c.h.b16 %v108
    %v594 = vunpack.c.l.b16 %v109
    %v595 = vunpack.c.h.b16 %v109
    %v596 = vunpack.c.l.b16 %v110
    %v597 = vunpack.c.h.b16 %v110
    %v598 = vunpack.c.l.b16 %v111
    %v599 = vunpack.c.h.b16 %v111
    %v600 = vunpack.c.l.b16 %v112
    %v601 = vunpack.c.h.b16 %v112
    %v602 = vunpack.c.l.b16 %v113
    %v603 = vunpack.c.h.b16 %v113
    %v604 = vunpack.c.l.b16 %v114
    %v605 = vunpack.c.h.b16 %v114
    %v606 = vunpack.c.l.b16 %v115
    %v607 = vunpack.c.h.b16 %v115
    %v608 = vunpack.c.l.b16 %v116
    %v609 = vunpack.c.h.b16 %v116
    %v610 = vunpack.c.l.b16 %v117
    %v611 = vunpack.c.h.b16 %v117
    %v612 = vunpack.c.l.b16 %v118
    %v613 = vunpack.c.h.b16 %v118
    %v614 = vunpack.c.l.b16 %v119
    %v615 = vunpack.c.h.b16 %v119
    %v616 = vunpack.c.l.b16 %v120
    %v617 = vunpack.c.h.b16 %v120
    %v618 = vunpack.c.l.b16 %v121
    %v619 = vunpack.c.h.b16 %v121
    %v620 = vunpack.c.l.b16 %v122
    %v621 = vunpack.c.h.b16 %v122
    %v622 = vunpack.c.l.b16 %v123
    %v623 = vunpack.c.h.b16 %v123
    %v624 = vunpack.c.l.b16 %v124
    %v625 = vunpack.c.h.b16 %v124
    %v626 = vunpack.c.l.b16 %v125
    %v627 = vunpack.c.h.b16 %v125
    %v628 = vunpack.c.l.b16 %v126
    %v629 = vunpack.c.h.b16 %v126
    %v630 = vunpack.c.l.b16 %v127
    %v631 = vunpack.c.h.b16 %v127
    %v632 = vunpack.c.l.b16 %v128
    %v633 = vunpack.c.h.b16 %v128
    %v634 = vunpack.c.l.b16 %v129
    %v635 = vunpack.c.h.b16 %v129
    %v636 = vunpack.c.l.b16 %v130
    %v637 = vunpack.c.h.b16 %v130
    %v638 = vunpack.c.l.b16 %v131
    %v639 = vunpack.c.h.b16 %v131
    %v640 = vunpack.c.l.b16 %v132
    %v641 = vunpack.c.h.b16 %v132
    %v642 = vunpack.c.l.b16 %v133
    %v643 = vunpack.c.h.b16 %v133
    %v644 = vunpack.c.l.b16 %v134
    %v645 = vunpack.c.h.b16 %v134
    %v646 = vunpack.c.l.b16 %v135
    %v647 = vunpack.c.h.b16 %v135
    %v648 = vunpack.c.l.b16 %v136
    %v649 = vunpack.c.h.b16 %v136
    %v650 = vunpack.c.l.b16 %v137
    %v651 = vunpack.c.h.b16 %v137
    %v652 = vunpack.c.l.b16 %v138
    %v653 = vunpack.c.h.b16 %v138
    %v654 = vunpack.c.l.b16 %v139
    %v655 = vunpack.c.h.b16 %v139
    %v656 = vunpack.c.l.b16 %v140
    %v657 = vunpack.c.h.b16 %v140
    %v658 = vunpack.c.l.b16 %v141
    %v659 = vunpack.c.h.b16 %v141
    %v660 = vunpack.c.l.b16 %v142
    %v661 = vunpack.c.h.b16 %v142
    %v662 = vunpack.c.l.b16 %v143
    %v663 = vunpack.c.h.b16 %v143
    %v664 = vunpack.c.l.b16 %v144
    %v665 = vunpack.c.h.b16 %v144
    %v666 = vunpack.c.l.b16 %v145
    %v667 = vunpack.c.h.b16 %v145
    %v668 = vunpack.c.l.b16 %v146
    %v669 = vunpack.c.h.b16 %v146
    %v670 = vunpack.c.l.b16 %v147
    %v671 = vunpack.c.h.b16 %v147
    %v672 = vunpack.c.l.b16 %v148
    %v673 = vunpack.c.h.b16 %v148
    %v674 = vunpack.c.l.b16 %v149
    %v675 = vunpack.c.h.b16 %v149
    %v676 = vunpack.c.l.b16 %v150
    %v677 = vunpack.c.h.b16 %v150
    %v678 = vunpack.c.l.b16 %v151
    %v679 = vunpack.c.h.b16 %v151
    %v680 = vunpack.c.l.b16 %v152
    %v681 = vunpack.c.h.b16 %v152
    %v682 = vunpack.c.l.b16 %v153
    %v683 = vunpack.c.h.b16 %v153
    %v684 = vunpack.c.l.b16 %v154
    %v685 = vunpack.c.h.b16 %v154
    %v686 = vunpack.c.l.b16 %v155
    %v687 = vunpack.c.h.b16 %v155
    %v688 = vunpack.c.l.b16 %v156
    %v689 = vunpack.c.h.b16 %v156
    %v690 = vunpack.c.l.b16 %v157
    %v691 = vunpack.c.h.b16 %v157
    %v692 = vunpack.c.l.b16 %v158
    %v693 = vunpack.c.h.b16 %v158
    %v694 = vunpack.c.l.b16 %v159
    %v695 = vunpack.c.h.b16 %v159
    %v696 = vunpack.c.l.b16 %v160
    %v697 = vunpack.c.h.b16 %v160
    %v698 = vunpack.c.l.b16 %v161
    %v699 = vunpack.c.h.b16 %v161
    %v700 = vunpack.c.l.b16 %v162
    %v701 = vunpack.c.h.b16 %v162
    %v702 = vunpack.c.l.b16 %v163
    %v703 = vunpack.c.h.b16 %v163
    %v704 = vunpack.c.l.b16 %v164
    %v705 = vunpack.c.h.b16 %v164
    %v706 = vunpack.c.l.b16 %v165
    %v707 = vunpack.c.h.b16 %v165
    %v708 = vunpack.c.l.b16 %v166
    %v709 = vunpack.c.h.b16 %v166
    %v710 = vunpack.c.l.b16 %v167
    %v711 = vunpack.c.h.b16 %v167
    %v712 = vunpack.c.l.b16 %v168
    %v713 = vunpack.c.h.b16 %v168
    %v714 = vunpack.c.l.b16 %v169
    %v715 = vunpack.c.h.b16 %v169
    %v716 = vunpack.c.l.b16 %v170
    %v717 = vunpack.c.h.b16 %v170
    %v718 = vunpack.c.l.b16 %v171
    %v719 = vunpack.c.h.b16 %v171
    %v720 = vunpack.c.l.b16 %v172
    %v721 = vunpack.c.h.b16 %v172
    %v722 = vunpack.c.l.b16 %v173
    %v723 = vunpack.c.h.b16 %v173
    %v724 = vunpack.c.l.b16 %v174
    %v725 = vunpack.c.h.b16 %v174
    %v726 = vunpack.c.l.b16 %v175
    %v727 = vunpack.c.h.b16 %v175
    %v728 = vunpack.c.l.b16 %v176
    %v729 = vunpack.c.h.b16 %v176
    %v730 = vunpack.c.l.b16 %v177
    %v731 = vunpack.c.h.b16 %v177
    %v732 = vunpack.c.l.b16 %v178
    %v733 = vunpack.c.h.b16 %v178
    %v734 = vunpack.c.l.b16 %v179
    %v735 = vunpack.c.h.b16 %v179
    %v736 = vunpack.c.l.b16 %v180
    %v737 = vunpack.c.h.b16 %v180
    %v738 = vunpack.c.l.b16 %v181
    %v739 = vunpack.c.h.b16 %v181
    %v740 = vunpack.c.l.b16 %v182
    %v741 = vunpack.c.h.b16 %v182
    %v742 = vunpack.c.l.b16 %v183
    %v743 = vunpack.c.h.b16 %v183
    %v744 = vunpack.c.l.b16 %v184
    %v745 = vunpack.c.h.b16 %v184
    %v746 = vunpack.c.l.b16 %v185
    %v747 = vunpack.c.h.b16 %v185
    %v748 = vunpack.c.l.b16 %v186
    %v749 = vunpack.c.h.b16 %v186
    %v750 = vunpack.c.l.b16 %v187
    %v751 = vunpack.c.h.b16 %v187
    %v752 = vunpack.c.l.b16 %v188
    %v753 = vunpack.c.h.b16 %v188
    %v754 = vunpack.c.l.b16 %v189
    %v755 = vunpack.c.h.b16 %v189
    %v756 = vunpack.c.l.b16 %v190
    %v757 = vunpack.c.h.b16 %v190
    %v758 = vunpack.c.l.b16 %v191
    %v759 = vunpack.c.h.b16 %v191
    %v760 = vunpack.c.l.b16 %v192
    %v761 = vunpack.c.h.b16 %v192
    %v762 = vunpack.c.l.b16 %v193
    %v763 = vunpack.c.h.b16 %v193
    %v764 = vunpack.c.l.b16 %v194
    %v765 = vunpack.c.h.b16 %v194
    %v766 = vunpack.c.l.b16 %v195
    %v767 = vunpack.c.h.b16 %v195
    %v768 = vunpack.c.l.b16 %v196
    %v769 = vunpack.c.h.b16 %v196
    %v770 = vunpack.c.l.b16 %v197
    %v771 = vunpack.c.h.b16 %v197
    %v772 = vunpack.c.l.b16 %v198
    %v773 = vunpack.c.h.b16 %v198
    %v774 = vunpack.c.l.b16 %v199
    %v775 = vunpack.c.h.b16 %v199
    %v776 = vunpack.c.l.b16 %v200
    %v777 = vunpack.c.h.b16 %v200
    %v778 = vunpack.c.l.b16 %v201
    %v779 = vunpack.c.h.b16 %v201
    %v780 = vunpack.c.l.b16 %v202
    %v781 = vunpack.c.h.b16 %v202
    %v782 = vunpack.c.l.b16 %v203
    %v783 = vunpack.c.h.b16 %v203
    %v784 = vunpack.c.l.b16 %v204
    %v785 = vunpack.c.h.b16 %v204
    %v786 = vunpack.c.l.b16 %v205
    %v787 = vunpack.c.h.b16 %v205
    %v788 = vunpack.c.l.b16 %v206
    %v789 = vunpack.c.h.b16 %v206
    %v790 = vunpack.c.l.b16 %v207
    %v791 = vunpack.c.h.b16 %v207
    %v792 = vunpack.c.l.b16 %v208
    %v793 = vunpack.c.h.b16 %v208
    %v794 = vunpack.c.l.b16 %v209
    %v795 = vunpack.c.h.b16 %v209
    %v796 = vunpack.c.l.b16 %v210
    %v797 = vunpack.c.h.b16 %v210
    %v798 = vunpack.c.l.b16 %v211
    %v799 = vunpack.c.h.b16 %v211
    %v800 = vunpack.c.l.b16 %v212
    %v801 = vunpack.c.h.b16 %v212
    %v802 = vunpack.c.l.b16 %v213
    %v803 = vunpack.c.h.b16 %v213
    %v804 = vunpack.c.l.b16 %v214
    %v805 = vunpack.c.h.b16 %v214
    %v806 = vunpack.c.l.b16 %v215
    %v807 = vunpack.c.h.b16 %v215
    %v808 = vunpack.c.l.b16 %v216
    %v809 = vunpack.c.h.b16 %v216
    %v810 = vunpack.c.l.b16 %v217
    %v811 = vunpack.c.h.b16 %v217
    %v812 = vunpack.c.l.b16 %v218
    %v813 = vunpack.c.h.b16 %v218
    %v814 = vunpack.c.l.b16 %v219
    %v815 = vunpack.c.h.b16 %v219
    %v816 = vunpack.c.l.b16 %v220
    %v817 = vunpack.c.h.b16 %v220
    %v818 = vunpack.c.l.b16 %v221
    %v819 = vunpack.c.h.b16 %v221
    %v820 = vunpack.c.l.b16 %v222
    %v821 = vunpack.c.h.b16 %v222
    %v822 = vunpack.c.l.b16 %v223
    %v823 = vunpack.c.h.b16 %v223
    %v824 = vunpack.c.l.b16 %v224
    %v825 = vunpack.c.h.b16 %v224
    %v826 = vunpack.c.l.b16 %v225
    %v827 = vunpack.c.h.b16 %v225
    %v828 = vunpack.c.l.b16 %v226
    %v829 = vunpack.c.h.b16 %v226
    %v830 = vunpack.c.l.b16 %v227
    %v831 = vunpack.c.h.b16 %v227
    %v832 = vunpack.c.l.b16 %v228
    %v833 = vunpack.c.h.b16 %v228
    %v834 = vunpack.c.l.b16 %v229
    %v835 = vunpack.c.h.b16 %v229
    %v836 = vunpack.c.l.b16 %v230
    %v837 = vunpack.c.h.b16 %v230
    %v838 = vunpack.c.l.b16 %v231
    %v839 = vunpack.c.h.b16 %v231
    %v840 = vunpack.c.l.b16 %v232
    %v841 = vunpack.c.h.b16 %v232
    %v842 = vpack.c.b16 %v452, %v442
    %v843 = vpack.c.b16 %v453, %v443
    %v844 = vpack.c.b16 %v454, %v444
    %v845 = vpack.c.b16 %v455, %v445
    %v846 = vpack.c.b16 %v456, %v446
    %v847 = vpack.c.b16 %v457, %v447
    %v848 = vpack.c.b16 %v458, %v448
    %v849 = vpack.c.b16 %v459, %v449
    %v850 = vpack.c.b16 %v460, %v450
    %v851 = vpack.c.b16 %v461, %v451
    %v852 = vpack.c.b16 %v472, %v462
    %v853 = vpack.c.b16 %v473, %v463
    %v854 = vpack.c.b16 %v474, %v464
    %v855 = vpack.c.b16 %v475, %v465
    %v856 = vpack.c.b16 %v476, %v466
    %v857 = vpack.c.b16 %v477, %v467
    %v858 = vpack.c.b16 %v478, %v468
    %v859 = vpack.c.b16 %v479, %v469
    %v860 = vpack.c.b16 %v480, %v470
    %v861 = vpack.c.b16 %v481, %v471
    %v862 = vpack.c.b16 %v492, %v482
    %v863 = vpack.c.b16 %v493, %v483
    %v864 = vpack.c.b16 %v494, %v484
    %v865 = vpack.c.b16 %v495, %v485
    %v866 = vpack.c.b16 %v496, %v486
    %v867 = vpack.c.b16 %v497, %v487
    %v868 = vpack.c.b16 %v498, %v488
    %v869 = vpack.c.b16 %v499, %v489
    %v870 = vpack.c.b16 %v500, %v490
    %v871 = vpack.c.b16 %v501, %v491
    %v872 = vpack.c.b16 %v512, %v502
    %v873 = vpack.c.b16 %v513, %v503
    %v874 = vpack.c.b16 %v514, %v504
    %v875 = vpack.c.b16 %v515, %v505
    %v876 = vpack.c.b16 %v516, %v506
    %v877 = vpack.c.b16 %v517, %v507
    %v878 = vpack.c.b16 %v518, %v508
    %v879 = vpack.c.b16 %v519, %v509
    %v880 = vpack.c.b16 %v520, %v510
    %v881 = vpack.c.b16 %v521, %v511
    %v882 = vpack.c.b16 %v532, %v522
    %v883 = vpack.c.b16 %v533, %v523
    %v884 = vpack.c.b16 %v534, %v524
    %v885 = vpack.c.b16 %v535, %v525
    %v886 = vpack.c.b16 %v536, %v526
    %v887 = vpack.c.b16 %v537, %v527
    %v888 = vpack.c.b16 %v538, %v528
    %v889 = vpack.c.b16 %v539, %v529
    %v890 = vpack.c.b16 %v540, %v530
    %v891 = vpack.c.b16 %v541, %v531
    %v892 = vpack.c.b16 %v552, %v542
    %v893 = vpack.c.b16 %v553, %v543
    %v894 = vpack.c.b16 %v554, %v544
    %v895 = vpack.c.b16 %v555, %v545
    %v896 = vpack.c.b16 %v556, %v546
    %v897 = vpack.c.b16 %v557, %v547
    %v898 = vpack.c.b16 %v558, %v548
    %v899 = vpack.c.b16 %v559, %v549
    %v900 = vpack.c.b16 %v560, %v550
    %v901 = vpack.c.b16 %v561, %v551
    %v902 = vpack.c.b16 %v572, %v562
    %v903 = vpack.c.b16 %v573, %v563
    %v904 = vpack.c.b16 %v574, %v564
    %v905 = vpack.c.b16 %v575, %v565
    %v906 = vpack.c.b16 %v576, %v566
    %v907 = vpack.c.b16 %v577, %v567
    %v908 = vpack.c.b16 %v578, %v568
    %v909 = vpack.c.b16 %v579, %v569
    %v910 = vpack.c.b16 %v580, %v570
    %v911 = vpack.c.b16 %v581, %v571
    %v912 = vpack.c.b16 %v592, %v582
    %v913 = vpack.c.b16 %v593, %v583
    %v914 = vpack.c.b16 %v594, %v584
    %v915 = vpack.c.b16 %v595, %v585
    %v916 = vpack.c.b16 %v596, %v586
    %v917 = vpack.c.b16 %v597, %v587
    %v918 = vpack.c.b16 %v598, %v588
    %v919 = vpack.c.b16 %v599, %v589
    %v920 = vpack.c.b16 %v600, %v590
    %v921 = vpack.c.b16 %v601, %v591
    %v922 = vpack.c.b16 %v612, %v602
    %v923 = vpack.c.b16 %v613, %v603
    %v924 = vpack.c.b16 %v614, %v604
    %v925 = vpack.c.b16 %v615, %v605
    %v926 = vpack.c.b16 %v616, %v606
    %v927 = vpack.c.b16 %v617, %v607
    %v928 = vpack.c.b16 %v618, %v608
    %v929 = vpack.c.b16 %v619, %v609
    %v930 = vpack.c.b16 %v620, %v610
    %v931 = vpack.c.b16 %v621, %v611
    %v932 = vpack.c.b16 %v632, %v622
    %v933 = vpack.c.b16 %v633, %v623
    %v934 = vpack.c.b16 %v634, %v624
    %v935 = vpack.c.b16 %v635, %v625
    %v936 = vpack.c.b16 %v636, %v626
    %v937 = vpack.c.b16 %v637, %v627
    %v938 = vpack.c.b16 %v638, %v628
    %v939 = vpack.c.b16 %v639, %v629
    %v940 = vpack.c.b16 %v640, %v630
    %v941 = vpack.c.b16 %v641, %v631
    %v942 = vpack.c.b16 %v652, %v642
    %v943 = vpack.c.b16 %v653, %v643
    %v944 = vpack.c.b16 %v654, %v644
    %v945 = vpack.c.b16 %v655, %v645
    %v946 = vpack.c.b16 %v656, %v646
    %v947 = vpack.c.b16 %v657, %v647
    %v948 = vpack.c.b16 %v658, %v648
    %v949 = vpack.c.b16 %v659, %v649
    %v950 = vpack.c.b16 %v660, %v650
    %v951 = vpack.c.b16 %v661, %v651
    %v952 = vpack.c.b16 %v672, %v662
    %v953 = vpack.c.b16 %v673, %v663
    %v954 = vpack.c.b16 %v674, %v664
    %v955 = vpack.c.b16 %v675, %v665
    %v956 = vpack.c.b16 %v676, %v666
    %v957 = vpack.c.b16 %v677, %v667
    %v958 = vpack.c.b16 %v678, %v668
    %v959 = vpack.c.b16 %v679, %v669
    %v960 = vpack.c.b16 %v680, %v670
    %v961 = vpack.c.b16 %v681, %v671
    %v962 = vpack.c.b16 %v692, %v682
    %v963 = vpack.c.b16 %v693, %v683
    %v964 = vpack.c.b16 %v694, %v684
    %v965 = vpack.c.b16 %v695, %v685
    %v966 = vpack.c.b16 %v696, %v686
    %v967 = vpack.c.b16 %v697, %v687
    %v968 = vpack.c.b16 %v698, %v688
    %v969 = vpack.c.b16 %v699, %v689
    %v970 = vpack.c.b16 %v700, %v690
    %v971 = vpack.c.b16 %v701, %v691
    %v972 = vpack.c.b16 %v712, %v702
    %v973 = vpack.c.b16 %v713, %v703
    %v974 = vpack.c.b16 %v714, %v704
    %v975 = vpack.c.b16 %v715, %v705
    %v976 = vpack.c.b16 %v716, %v706
    %v977 = vpack.c.b16 %v717, %v707
    %v978 = vpack.c.b16 %v718, %v708
    %v979 = vpack.c.b16 %v719, %v709
    %v980 = vpack.c.b16 %v720, %v710
    %v981 = vpack.c.b16 %v721, %v711
    %v982 = vpack.c.b16 %v732, %v722
    %v983 = vpack.c.b16 %v733, %v723
    %v984 = vpack.c.b16 %v734, %v724
    %v985 = vpack.c.b16 %v735, %v725
    %v986 = vpack.c.b16 %v736, %v726
    %v987 = vpack.c.b16 %v737, %v727
    %v988 = vpack.c.b16 %v738, %v728
    %v989 = vpack.c.b16 %v739, %v729
    %v990 = vpack.c.b16 %v740, %v730
    %v991 = vpack.c.b16 %v741, %v731
    %v992 = vpack.c.b16 %v752, %v742
    %v993 = vpack.c.b16 %v753, %v743
    %v994 = vpack.c.b16 %v754, %v744
    %v995 = vpack.c.b16 %v755, %v745
    %v996 = vpack.c.b16 %v756, %v746
    %v997 = vpack.c.b16 %v757, %v747
    %v998 = vpack.c.b16 %v758, %v748
    %v999 = vpack.c.b16 %v759, %v749
    %v1000 = vpack.c.b16 %v760, %v750
    %v1001 = vpack.c.b16 %v761, %v751
    %v1002 = vpack.c.b16 %v772, %v762
    %v1003 = vpack.c.b16 %v773, %v763
    %v1004 = vpack.c.b16 %v774, %v764
    %v1005 = vpack.c.b16 %v775, %v765
    %v1006 = vpack.c.b16 %v776, %v766
    %v1007 = vpack.c.b16 %v777, %v767
    %v1008 = vpack.c.b16 %v778, %v768
    %v1009 = vpack.c.b16 %v779, %v769
    %v1010 = vpack.c.b16 %v780, %v770
    %v1011 = vpack.c.b16 %v781, %v771
    %v1012 = vpack.c.b16 %v792, %v782
    %v1013 = vpack.c.b16 %v793, %v783
    %v1014 = vpack.c.b16 %v794, %v784
    %v1015 = vpack.c.b16 %v795, %v785
    %v1016 = vpack.c.b16 %v796, %v786
    %v1017 = vpack.c.b16 %v797, %v787
    %v1018 = vpack.c.b16 %v798, %v788
    %v1019 = vpack.c.b16 %v799, %v789
    %v1020 = vpack.c.b16 %v800, %v790
    %v1021 = vpack.c.b16 %v801, %v791
    %v1022 = vpack.c.b16 %v812, %v802
    %v1023 = vpack.c.b16 %v813, %v803
    %v1024 = vpack.c.b16 %v814, %v804
    %v1025 = vpack.c.b16 %v815, %v805
    %v1026 = vpack.c.b16 %v816, %v806
    %v1027 = vpack.c.b16 %v817, %v807
    %v1028 = vpack.c.b16 %v818, %v808
    %v1029 = vpack.c.b16 %v819, %v809
    %v1030 = vpack.c.b16 %v820, %v810
    %v1031 = vpack.c.b16 %v821, %v811
    %v1032 = vpack.c.b16 %v832, %v822
    %v1033 = vpack.c.b16 %v833, %v823
    %v1034 = vpack.c.b16 %v834, %v824
    %v1035 = vpack.c.b16 %v835, %v825
    %v1036 = vpack.c.b16 %v836, %v826
    %v1037 = vpack.c.b16 %v837, %v827
    %v1038 = vpack.c.b16 %v838, %v828
    %v1039 = vpack.c.b16 %v839, %v829
    %v1040 = vpack.c.b16 %v840, %v830
    %v1041 = vpack.c.b16 %v841, %v831
    %v1244 = vperm.slane %v233, 0
    %v1245 = vperm.slane %v233, 1
    %v1246 = vperm.slane %v233, 2
    %v1247 = vperm.slane %v233, 3
    %v1248 = vperm.slane %v233, 4
    %v1249 = vperm.slane %v233, 5
    %v1250 = vperm.slane %v233, 6
    %v1251 = vperm.slane %v233, 7
    %v1252 = vperm.slane %v234, 0
    %v1253 = vperm.slane %v234, 1
    %vm1264 = vcmask 523264
    %v1265 = vsel %vm1264, %v239, 0
    %1267 = vmatpush.bf16.msra.mxu0 %v912
    %1268 = vmatpush.bf16.msra.mxu0 %v902
    %1269 = vmatpush.bf16.msra.mxu0 %v892
    %1270 = vmatpush.bf16.msra.mxu0 %v882
    %1271 = vmatpush.bf16.msra.mxu0 %v872
    %1272 = vmatpush.bf16.msra.mxu0 %v862
    %1273 = vmatpush.bf16.msra.mxu0 %v852
    %1274 = vmatpush.bf16.msra.mxu0 %v842
    %1275 = vmatmul.bf16.gmra.mxu0 %v237
    %v1276 = vpop.f32.mrf.mxu0
    %v1277 = vadd.f32 %v1244, %v1276
    %v1278 = vpop.f32.mrf.mxu0
    %1279 = vdwg.mxu0
    %1280 = vmatpush.bf16.msra.mxu0 %v992
    %1281 = vmatpush.bf16.msra.mxu0 %v982
    %1282 = vmatpush.bf16.msra.mxu0 %v972
    %1283 = vmatpush.bf16.msra.mxu0 %v962
    %1284 = vmatpush.bf16.msra.mxu0 %v952
    %1285 = vmatpush.bf16.msra.mxu0 %v942
    %1286 = vmatpush.bf16.msra.mxu0 %v932
    %1287 = vmatpush.bf16.msra.mxu0 %v922
    %1288 = vmatmul.bf16.gmra.mxu0 %v238
    %v1289 = vpop.f32.mrf.mxu0
    %v1290 = vadd.f32 %v1277, %v1289
    %v1291 = vpop.f32.mrf.mxu0
    %1292 = vdwg.mxu0
    %1293 = vmatpush.bf16.msra.mxu0 0
    %1294 = vmatpush.bf16.msra.mxu0 0
    %1295 = vmatpush.bf16.msra.mxu0 0
    %1296 = vmatpush.bf16.msra.mxu0 0
    %1297 = vmatpush.bf16.msra.mxu0 %v1032
    %1298 = vmatpush.bf16.msra.mxu0 %v1022
    %1299 = vmatpush.bf16.msra.mxu0 %v1012
    %1300 = vmatpush.bf16.msra.mxu0 %v1002
    %1301 = vmatmul.bf16.gmra.mxu0 %v1265
    %v1302 = vpop.f32.mrf.mxu0
    %v1303 = vadd.f32 %v1290, %v1302
    %v1304 = vpop.f32.mrf.mxu0
    %1305 = vdwg.mxu0
    %1306 = vmatpush.bf16.msra.mxu0 %v913
    %1307 = vmatpush.bf16.msra.mxu0 %v903
    %1308 = vmatpush.bf16.msra.mxu0 %v893
    %1309 = vmatpush.bf16.msra.mxu0 %v883
    %1310 = vmatpush.bf16.msra.mxu0 %v873
    %1311 = vmatpush.bf16.msra.mxu0 %v863
    %1312 = vmatpush.bf16.msra.mxu0 %v853
    %1313 = vmatpush.bf16.msra.mxu0 %v843
    %1314 = vmatmul.bf16.gmra.mxu0 %v237
    %v1315 = vpop.f32.mrf.mxu0
    %v1316 = vadd.f32 %v1245, %v1315
    %v1317 = vpop.f32.mrf.mxu0
    %1318 = vdwg.mxu0
    %1319 = vmatpush.bf16.msra.mxu0 %v993
    %1320 = vmatpush.bf16.msra.mxu0 %v983
    %1321 = vmatpush.bf16.msra.mxu0 %v973
    %1322 = vmatpush.bf16.msra.mxu0 %v963
    %1323 = vmatpush.bf16.msra.mxu0 %v953
    %1324 = vmatpush.bf16.msra.mxu0 %v943
    %1325 = vmatpush.bf16.msra.mxu0 %v933
    %1326 = vmatpush.bf16.msra.mxu0 %v923
    %1327 = vmatmul.bf16.gmra.mxu0 %v238
    %v1328 = vpop.f32.mrf.mxu0
    %v1329 = vadd.f32 %v1316, %v1328
    %v1330 = vpop.f32.mrf.mxu0
    %1331 = vdwg.mxu0
    %1332 = vmatpush.bf16.msra.mxu0 0
    %1333 = vmatpush.bf16.msra.mxu0 0
    %1334 = vmatpush.bf16.msra.mxu0 0
    %1335 = vmatpush.bf16.msra.mxu0 0
    %1336 = vmatpush.bf16.msra.mxu0 %v1033
    %1337 = vmatpush.bf16.msra.mxu0 %v1023
    %1338 = vmatpush.bf16.msra.mxu0 %v1013
    %1339 = vmatpush.bf16.msra.mxu0 %v1003
    %1340 = vmatmul.bf16.gmra.mxu0 %v1265
    %v1341 = vpop.f32.mrf.mxu0
    %v1342 = vadd.f32 %v1329, %v1341
    %v1343 = vpop.f32.mrf.mxu0
    %1344 = vdwg.mxu0
    %1345 = vmatpush.bf16.msra.mxu0 %v914
    %1346 = vmatpush.bf16.msra.mxu0 %v904
    %1347 = vmatpush.bf16.msra.mxu0 %v894
    %1348 = vmatpush.bf16.msra.mxu0 %v884
    %1349 = vmatpush.bf16.msra.mxu0 %v874
    %1350 = vmatpush.bf16.msra.mxu0 %v864
    %1351 = vmatpush.bf16.msra.mxu0 %v854
    %1352 = vmatpush.bf16.msra.mxu0 %v844
    %1353 = vmatmul.bf16.gmra.mxu0 %v237
    %v1354 = vpop.f32.mrf.mxu0
    %v1355 = vadd.f32 %v1246, %v1354
    %v1356 = vpop.f32.mrf.mxu0
    %1357 = vdwg.mxu0
    %1358 = vmatpush.bf16.msra.mxu0 %v994
    %1359 = vmatpush.bf16.msra.mxu0 %v984
    %1360 = vmatpush.bf16.msra.mxu0 %v974
    %1361 = vmatpush.bf16.msra.mxu0 %v964
    %1362 = vmatpush.bf16.msra.mxu0 %v954
    %1363 = vmatpush.bf16.msra.mxu0 %v944
    %1364 = vmatpush.bf16.msra.mxu0 %v934
    %1365 = vmatpush.bf16.msra.mxu0 %v924
    %1366 = vmatmul.bf16.gmra.mxu0 %v238
    %v1367 = vpop.f32.mrf.mxu0
    %v1368 = vadd.f32 %v1355, %v1367
    %v1369 = vpop.f32.mrf.mxu0
    %1370 = vdwg.mxu0
    %1371 = vmatpush.bf16.msra.mxu0 0
    %1372 = vmatpush.bf16.msra.mxu0 0
    %1373 = vmatpush.bf16.msra.mxu0 0
    %1374 = vmatpush.bf16.msra.mxu0 0
    %1375 = vmatpush.bf16.msra.mxu0 %v1034
    %1376 = vmatpush.bf16.msra.mxu0 %v1024
    %1377 = vmatpush.bf16.msra.mxu0 %v1014
    %1378 = vmatpush.bf16.msra.mxu0 %v1004
    %1379 = vmatmul.bf16.gmra.mxu0 %v1265
    %v1380 = vpop.f32.mrf.mxu0
    %v1381 = vadd.f32 %v1368, %v1380
    %v1382 = vpop.f32.mrf.mxu0
    %1383 = vdwg.mxu0
    %1384 = vmatpush.bf16.msra.mxu0 %v915
    %1385 = vmatpush.bf16.msra.mxu0 %v905
    %1386 = vmatpush.bf16.msra.mxu0 %v895
    %1387 = vmatpush.bf16.msra.mxu0 %v885
    %1388 = vmatpush.bf16.msra.mxu0 %v875
    %1389 = vmatpush.bf16.msra.mxu0 %v865
    %1390 = vmatpush.bf16.msra.mxu0 %v855
    %1391 = vmatpush.bf16.msra.mxu0 %v845
    %1392 = vmatmul.bf16.gmra.mxu0 %v237
    %v1393 = vpop.f32.mrf.mxu0
    %v1394 = vadd.f32 %v1247, %v1393
    %v1395 = vpop.f32.mrf.mxu0
    %1396 = vdwg.mxu0
    %1397 = vmatpush.bf16.msra.mxu0 %v995
    %1398 = vmatpush.bf16.msra.mxu0 %v985
    %1399 = vmatpush.bf16.msra.mxu0 %v975
    %1400 = vmatpush.bf16.msra.mxu0 %v965
    %1401 = vmatpush.bf16.msra.mxu0 %v955
    %1402 = vmatpush.bf16.msra.mxu0 %v945
    %1403 = vmatpush.bf16.msra.mxu0 %v935
    %1404 = vmatpush.bf16.msra.mxu0 %v925
    %1405 = vmatmul.bf16.gmra.mxu0 %v238
    %v1406 = vpop.f32.mrf.mxu0
    %v1407 = vadd.f32 %v1394, %v1406
    %v1408 = vpop.f32.mrf.mxu0
    %1409 = vdwg.mxu0
    %1410 = vmatpush.bf16.msra.mxu0 0
    %1411 = vmatpush.bf16.msra.mxu0 0
    %1412 = vmatpush.bf16.msra.mxu0 0
    %1413 = vmatpush.bf16.msra.mxu0 0
    %1414 = vmatpush.bf16.msra.mxu0 %v1035
    %1415 = vmatpush.bf16.msra.mxu0 %v1025
    %1416 = vmatpush.bf16.msra.mxu0 %v1015
    %1417 = vmatpush.bf16.msra.mxu0 %v1005
    %1418 = vmatmul.bf16.gmra.mxu0 %v1265
    %v1419 = vpop.f32.mrf.mxu0
    %v1420 = vadd.f32 %v1407, %v1419
    %v1421 = vpop.f32.mrf.mxu0
    %1422 = vdwg.mxu0
    %1423 = vmatpush.bf16.msra.mxu0 %v916
    %1424 = vmatpush.bf16.msra.mxu0 %v906
    %1425 = vmatpush.bf16.msra.mxu0 %v896
    %1426 = vmatpush.bf16.msra.mxu0 %v886
    %1427 = vmatpush.bf16.msra.mxu0 %v876
    %1428 = vmatpush.bf16.msra.mxu0 %v866
    %1429 = vmatpush.bf16.msra.mxu0 %v856
    %1430 = vmatpush.bf16.msra.mxu0 %v846
    %1431 = vmatmul.bf16.gmra.mxu0 %v237
    %v1432 = vpop.f32.mrf.mxu0
    %v1433 = vadd.f32 %v1248, %v1432
    %v1434 = vpop.f32.mrf.mxu0
    %1435 = vdwg.mxu0
    %1436 = vmatpush.bf16.msra.mxu0 %v996
    %1437 = vmatpush.bf16.msra.mxu0 %v986
    %1438 = vmatpush.bf16.msra.mxu0 %v976
    %1439 = vmatpush.bf16.msra.mxu0 %v966
    %1440 = vmatpush.bf16.msra.mxu0 %v956
    %1441 = vmatpush.bf16.msra.mxu0 %v946
    %1442 = vmatpush.bf16.msra.mxu0 %v936
    %1443 = vmatpush.bf16.msra.mxu0 %v926
    %1444 = vmatmul.bf16.gmra.mxu0 %v238
    %v1445 = vpop.f32.mrf.mxu0
    %v1446 = vadd.f32 %v1433, %v1445
    %v1447 = vpop.f32.mrf.mxu0
    %1448 = vdwg.mxu0
    %1449 = vmatpush.bf16.msra.mxu0 0
    %1450 = vmatpush.bf16.msra.mxu0 0
    %1451 = vmatpush.bf16.msra.mxu0 0
    %1452 = vmatpush.bf16.msra.mxu0 0
    %1453 = vmatpush.bf16.msra.mxu0 %v1036
    %1454 = vmatpush.bf16.msra.mxu0 %v1026
    %1455 = vmatpush.bf16.msra.mxu0 %v1016
    %1456 = vmatpush.bf16.msra.mxu0 %v1006
    %1457 = vmatmul.bf16.gmra.mxu0 %v1265
    %v1458 = vpop.f32.mrf.mxu0
    %v1459 = vadd.f32 %v1446, %v1458
    %v1460 = vpop.f32.mrf.mxu0
    %1461 = vdwg.mxu0
    %1462 = vmatpush.bf16.msra.mxu0 %v917
    %1463 = vmatpush.bf16.msra.mxu0 %v907
    %1464 = vmatpush.bf16.msra.mxu0 %v897
    %1465 = vmatpush.bf16.msra.mxu0 %v887
    %1466 = vmatpush.bf16.msra.mxu0 %v877
    %1467 = vmatpush.bf16.msra.mxu0 %v867
    %1468 = vmatpush.bf16.msra.mxu0 %v857
    %1469 = vmatpush.bf16.msra.mxu0 %v847
    %1470 = vmatmul.bf16.gmra.mxu0 %v237
    %v1471 = vpop.f32.mrf.mxu0
    %v1472 = vadd.f32 %v1249, %v1471
    %v1473 = vpop.f32.mrf.mxu0
    %1474 = vdwg.mxu0
    %1475 = vmatpush.bf16.msra.mxu0 %v997
    %1476 = vmatpush.bf16.msra.mxu0 %v987
    %1477 = vmatpush.bf16.msra.mxu0 %v977
    %1478 = vmatpush.bf16.msra.mxu0 %v967
    %1479 = vmatpush.bf16.msra.mxu0 %v957
    %1480 = vmatpush.bf16.msra.mxu0 %v947
    %1481 = vmatpush.bf16.msra.mxu0 %v937
    %1482 = vmatpush.bf16.msra.mxu0 %v927
    %1483 = vmatmul.bf16.gmra.mxu0 %v238
    %v1484 = vpop.f32.mrf.mxu0
    %v1485 = vadd.f32 %v1472, %v1484
    %v1486 = vpop.f32.mrf.mxu0
    %1487 = vdwg.mxu0
    %1488 = vmatpush.bf16.msra.mxu0 0
    %1489 = vmatpush.bf16.msra.mxu0 0
    %1490 = vmatpush.bf16.msra.mxu0 0
    %1491 = vmatpush.bf16.msra.mxu0 0
    %1492 = vmatpush.bf16.msra.mxu0 %v1037
    %1493 = vmatpush.bf16.msra.mxu0 %v1027
    %1494 = vmatpush.bf16.msra.mxu0 %v1017
    %1495 = vmatpush.bf16.msra.mxu0 %v1007
    %1496 = vmatmul.bf16.gmra.mxu0 %v1265
    %v1497 = vpop.f32.mrf.mxu0
    %v1498 = vadd.f32 %v1485, %v1497
    %v1499 = vpop.f32.mrf.mxu0
    %1500 = vdwg.mxu0
    %1501 = vmatpush.bf16.msra.mxu0 %v918
    %1502 = vmatpush.bf16.msra.mxu0 %v908
    %1503 = vmatpush.bf16.msra.mxu0 %v898
    %1504 = vmatpush.bf16.msra.mxu0 %v888
    %1505 = vmatpush.bf16.msra.mxu0 %v878
    %1506 = vmatpush.bf16.msra.mxu0 %v868
    %1507 = vmatpush.bf16.msra.mxu0 %v858
    %1508 = vmatpush.bf16.msra.mxu0 %v848
    %1509 = vmatmul.bf16.gmra.mxu0 %v237
    %v1510 = vpop.f32.mrf.mxu0
    %v1511 = vadd.f32 %v1250, %v1510
    %v1512 = vpop.f32.mrf.mxu0
    %1513 = vdwg.mxu0
    %1514 = vmatpush.bf16.msra.mxu0 %v998
    %1515 = vmatpush.bf16.msra.mxu0 %v988
    %1516 = vmatpush.bf16.msra.mxu0 %v978
    %1517 = vmatpush.bf16.msra.mxu0 %v968
    %1518 = vmatpush.bf16.msra.mxu0 %v958
    %1519 = vmatpush.bf16.msra.mxu0 %v948
    %1520 = vmatpush.bf16.msra.mxu0 %v938
    %1521 = vmatpush.bf16.msra.mxu0 %v928
    %1522 = vmatmul.bf16.gmra.mxu0 %v238
    %v1523 = vpop.f32.mrf.mxu0
    %v1524 = vadd.f32 %v1511, %v1523
    %v1525 = vpop.f32.mrf.mxu0
    %1526 = vdwg.mxu0
    %1527 = vmatpush.bf16.msra.mxu0 0
    %1528 = vmatpush.bf16.msra.mxu0 0
    %1529 = vmatpush.bf16.msra.mxu0 0
    %1530 = vmatpush.bf16.msra.mxu0 0
    %1531 = vmatpush.bf16.msra.mxu0 %v1038
    %1532 = vmatpush.bf16.msra.mxu0 %v1028
    %1533 = vmatpush.bf16.msra.mxu0 %v1018
    %1534 = vmatpush.bf16.msra.mxu0 %v1008
    %1535 = vmatmul.bf16.gmra.mxu0 %v1265
    %v1536 = vpop.f32.mrf.mxu0
    %v1537 = vadd.f32 %v1524, %v1536
    %v1538 = vpop.f32.mrf.mxu0
    %1539 = vdwg.mxu0
    %1540 = vmatpush.bf16.msra.mxu0 %v919
    %1541 = vmatpush.bf16.msra.mxu0 %v909
    %1542 = vmatpush.bf16.msra.mxu0 %v899
    %1543 = vmatpush.bf16.msra.mxu0 %v889
    %1544 = vmatpush.bf16.msra.mxu0 %v879
    %1545 = vmatpush.bf16.msra.mxu0 %v869
    %1546 = vmatpush.bf16.msra.mxu0 %v859
    %1547 = vmatpush.bf16.msra.mxu0 %v849
    %1548 = vmatmul.bf16.gmra.mxu0 %v237
    %v1549 = vpop.f32.mrf.mxu0
    %v1550 = vadd.f32 %v1251, %v1549
    %v1551 = vpop.f32.mrf.mxu0
    %1552 = vdwg.mxu0
    %1553 = vmatpush.bf16.msra.mxu0 %v999
    %1554 = vmatpush.bf16.msra.mxu0 %v989
    %1555 = vmatpush.bf16.msra.mxu0 %v979
    %1556 = vmatpush.bf16.msra.mxu0 %v969
    %1557 = vmatpush.bf16.msra.mxu0 %v959
    %1558 = vmatpush.bf16.msra.mxu0 %v949
    %1559 = vmatpush.bf16.msra.mxu0 %v939
    %1560 = vmatpush.bf16.msra.mxu0 %v929
    %1561 = vmatmul.bf16.gmra.mxu0 %v238
    %v1562 = vpop.f32.mrf.mxu0
    %v1563 = vadd.f32 %v1550, %v1562
    %v1564 = vpop.f32.mrf.mxu0
    %1565 = vdwg.mxu0
    %1566 = vmatpush.bf16.msra.mxu0 0
    %1567 = vmatpush.bf16.msra.mxu0 0
    %1568 = vmatpush.bf16.msra.mxu0 0
    %1569 = vmatpush.bf16.msra.mxu0 0
    %1570 = vmatpush.bf16.msra.mxu0 %v1039
    %1571 = vmatpush.bf16.msra.mxu0 %v1029
    %1572 = vmatpush.bf16.msra.mxu0 %v1019
    %1573 = vmatpush.bf16.msra.mxu0 %v1009
    %1574 = vmatmul.bf16.gmra.mxu0 %v1265
    %v1575 = vpop.f32.mrf.mxu0
    %v1576 = vadd.f32 %v1563, %v1575
    %v1577 = vpop.f32.mrf.mxu0
    %1578 = vdwg.mxu0
    %1579 = vmatpush.bf16.msra.mxu0 %v920
    %1580 = vmatpush.bf16.msra.mxu0 %v910
    %1581 = vmatpush.bf16.msra.mxu0 %v900
    %1582 = vmatpush.bf16.msra.mxu0 %v890
    %1583 = vmatpush.bf16.msra.mxu0 %v880
    %1584 = vmatpush.bf16.msra.mxu0 %v870
    %1585 = vmatpush.bf16.msra.mxu0 %v860
    %1586 = vmatpush.bf16.msra.mxu0 %v850
    %1587 = vmatmul.bf16.gmra.mxu0 %v237
    %v1588 = vpop.f32.mrf.mxu0
    %v1589 = vadd.f32 %v1252, %v1588
    %v1590 = vpop.f32.mrf.mxu0
    %1591 = vdwg.mxu0
    %1592 = vmatpush.bf16.msra.mxu0 %v1000
    %1593 = vmatpush.bf16.msra.mxu0 %v990
    %1594 = vmatpush.bf16.msra.mxu0 %v980
    %1595 = vmatpush.bf16.msra.mxu0 %v970
    %1596 = vmatpush.bf16.msra.mxu0 %v960
    %1597 = vmatpush.bf16.msra.mxu0 %v950
    %1598 = vmatpush.bf16.msra.mxu0 %v940
    %1599 = vmatpush.bf16.msra.mxu0 %v930
    %1600 = vmatmul.bf16.gmra.mxu0 %v238
    %v1601 = vpop.f32.mrf.mxu0
    %v1602 = vadd.f32 %v1589, %v1601
    %v1603 = vpop.f32.mrf.mxu0
    %1604 = vdwg.mxu0
    %1605 = vmatpush.bf16.msra.mxu0 0
    %1606 = vmatpush.bf16.msra.mxu0 0
    %1607 = vmatpush.bf16.msra.mxu0 0
    %1608 = vmatpush.bf16.msra.mxu0 0
    %1609 = vmatpush.bf16.msra.mxu0 %v1040
    %1610 = vmatpush.bf16.msra.mxu0 %v1030
    %1611 = vmatpush.bf16.msra.mxu0 %v1020
    %1612 = vmatpush.bf16.msra.mxu0 %v1010
    %1613 = vmatmul.bf16.gmra.mxu0 %v1265
    %v1614 = vpop.f32.mrf.mxu0
    %v1615 = vadd.f32 %v1602, %v1614
    %v1616 = vpop.f32.mrf.mxu0
    %1617 = vdwg.mxu0
    %1618 = vmatpush.bf16.msra.mxu0 %v921
    %1619 = vmatpush.bf16.msra.mxu0 %v911
    %1620 = vmatpush.bf16.msra.mxu0 %v901
    %1621 = vmatpush.bf16.msra.mxu0 %v891
    %1622 = vmatpush.bf16.msra.mxu0 %v881
    %1623 = vmatpush.bf16.msra.mxu0 %v871
    %1624 = vmatpush.bf16.msra.mxu0 %v861
    %1625 = vmatpush.bf16.msra.mxu0 %v851
    %1626 = vmatmul.bf16.gmra.mxu0 %v237
    %v1627 = vpop.f32.mrf.mxu0
    %v1628 = vadd.f32 %v1253, %v1627
    %v1629 = vpop.f32.mrf.mxu0
    %1630 = vdwg.mxu0
    %1631 = vmatpush.bf16.msra.mxu0 %v1001
    %1632 = vmatpush.bf16.msra.mxu0 %v991
    %1633 = vmatpush.bf16.msra.mxu0 %v981
    %1634 = vmatpush.bf16.msra.mxu0 %v971
    %1635 = vmatpush.bf16.msra.mxu0 %v961
    %1636 = vmatpush.bf16.msra.mxu0 %v951
    %1637 = vmatpush.bf16.msra.mxu0 %v941
    %1638 = vmatpush.bf16.msra.mxu0 %v931
    %1639 = vmatmul.bf16.gmra.mxu0 %v238
    %v1640 = vpop.f32.mrf.mxu0
    %v1641 = vadd.f32 %v1628, %v1640
    %v1642 = vpop.f32.mrf.mxu0
    %1643 = vdwg.mxu0
    %1644 = vmatpush.bf16.msra.mxu0 0
    %1645 = vmatpush.bf16.msra.mxu0 0
    %1646 = vmatpush.bf16.msra.mxu0 0
    %1647 = vmatpush.bf16.msra.mxu0 0
    %1648 = vmatpush.bf16.msra.mxu0 %v1041
    %1649 = vmatpush.bf16.msra.mxu0 %v1031
    %1650 = vmatpush.bf16.msra.mxu0 %v1021
    %1651 = vmatpush.bf16.msra.mxu0 %v1011
    %1652 = vmatmul.bf16.gmra.mxu0 %v1265
    %v1653 = vpop.f32.mrf.mxu0
    %v1654 = vadd.f32 %v1641, %v1653
    %v1655 = vpop.f32.mrf.mxu0
    %1656 = vdwg.mxu0
    %v1657 = vxor.u32 %v1303, 2147483648
    %v1658 = vxor.u32 %v1342, 2147483648
    %v1659 = vxor.u32 %v1381, 2147483648
    %v1660 = vxor.u32 %v1420, 2147483648
    %v1661 = vxor.u32 %v1459, 2147483648
    %v1662 = vxor.u32 %v1498, 2147483648
    %v1663 = vxor.u32 %v1537, 2147483648
    %v1664 = vxor.u32 %v1576, 2147483648
    %v1665 = vxor.u32 %v1615, 2147483648
    %v1666 = vxor.u32 %v1654, 2147483648
    %v1667 = vmul.f32 %v1657, 1.442695
    %v1668 = vpow.pop %v1667
    %v1669 = vmul.f32 %v1658, 1.442695
    %v1670 = vpow.pop %v1669
    %v1671 = vmul.f32 %v1659, 1.442695
    %v1672 = vpow.pop %v1671
    %v1673 = vmul.f32 %v1660, 1.442695
    %v1674 = vpow.pop %v1673
    %v1675 = vmul.f32 %v1661, 1.442695
    %v1676 = vpow.pop %v1675
    %v1677 = vmul.f32 %v1662, 1.442695
    %v1678 = vpow.pop %v1677
    %v1679 = vmul.f32 %v1663, 1.442695
    %v1680 = vpow.pop %v1679
    %v1681 = vmul.f32 %v1664, 1.442695
    %v1682 = vpow.pop %v1681
    %v1683 = vmul.f32 %v1665, 1.442695
    %v1684 = vpow.pop %v1683
    %v1685 = vmul.f32 %v1666, 1.442695
    %v1686 = vpow.pop %v1685
    %v1687 = vadd.f32 %v1668, 1.0
    %v1688 = vadd.f32 %v1670, 1.0
    %v1689 = vadd.f32 %v1672, 1.0
    %v1690 = vadd.f32 %v1674, 1.0
    %v1691 = vadd.f32 %v1676, 1.0
    %v1692 = vadd.f32 %v1678, 1.0
    %v1693 = vadd.f32 %v1680, 1.0
    %v1694 = vadd.f32 %v1682, 1.0
    %v1695 = vadd.f32 %v1684, 1.0
    %v1696 = vadd.f32 %v1686, 1.0
    %v1697 = vrcp.pop %v1687
    %v1698 = vmul.f32 %v1687, %v1697
    %v1699 = vsub.f32 1.0, %v1698
    %v1700 = vmul.f32 %v1697, %v1699
    %v1701 = vadd.f32 %v1697, %v1700
    %vm1702 = vweird.f32 %v1687
    %vm1703 = vweird.f32 %v1697
    %vm1704 = vmor %vm1702, %vm1703
    %v1705 = vsel %vm1704, %v1697, %v1701
    %v1706 = vand.u32 2147483647, %v1687
    %vm1707 = vcmp.eq.f32.partialorder %v1706, 8.507059e+37
    %v1708 = vand.u32 %v1687, 2147483648
    %v1709 = vor.u32 1.1754944e-38, %v1708
    %v1710 = vsel %vm1707, %v1709, %v1705
    %v1711 = vmul.f32 1.0, %v1710
    %v1712 = vrcp.pop %v1688
    %v1713 = vmul.f32 %v1688, %v1712
    %v1714 = vsub.f32 1.0, %v1713
    %v1715 = vmul.f32 %v1712, %v1714
    %v1716 = vadd.f32 %v1712, %v1715
    %vm1717 = vweird.f32 %v1688
    %vm1718 = vweird.f32 %v1712
    %vm1719 = vmor %vm1717, %vm1718
    %v1720 = vsel %vm1719, %v1712, %v1716
    %v1721 = vand.u32 2147483647, %v1688
    %vm1722 = vcmp.eq.f32.partialorder %v1721, 8.507059e+37
    %v1723 = vand.u32 %v1688, 2147483648
    %v1724 = vor.u32 1.1754944e-38, %v1723
    %v1725 = vsel %vm1722, %v1724, %v1720
    %v1726 = vmul.f32 1.0, %v1725
    %v1727 = vrcp.pop %v1689
    %v1728 = vmul.f32 %v1689, %v1727
    %v1729 = vsub.f32 1.0, %v1728
    %v1730 = vmul.f32 %v1727, %v1729
    %v1731 = vadd.f32 %v1727, %v1730
    %vm1732 = vweird.f32 %v1689
    %vm1733 = vweird.f32 %v1727
    %vm1734 = vmor %vm1732, %vm1733
    %v1735 = vsel %vm1734, %v1727, %v1731
    %v1736 = vand.u32 2147483647, %v1689
    %vm1737 = vcmp.eq.f32.partialorder %v1736, 8.507059e+37
    %v1738 = vand.u32 %v1689, 2147483648
    %v1739 = vor.u32 1.1754944e-38, %v1738
    %v1740 = vsel %vm1737, %v1739, %v1735
    %v1741 = vmul.f32 1.0, %v1740
    %v1742 = vrcp.pop %v1690
    %v1743 = vmul.f32 %v1690, %v1742
    %v1744 = vsub.f32 1.0, %v1743
    %v1745 = vmul.f32 %v1742, %v1744
    %v1746 = vadd.f32 %v1742, %v1745
    %vm1747 = vweird.f32 %v1690
    %vm1748 = vweird.f32 %v1742
    %vm1749 = vmor %vm1747, %vm1748
    %v1750 = vsel %vm1749, %v1742, %v1746
    %v1751 = vand.u32 2147483647, %v1690
    %vm1752 = vcmp.eq.f32.partialorder %v1751, 8.507059e+37
    %v1753 = vand.u32 %v1690, 2147483648
    %v1754 = vor.u32 1.1754944e-38, %v1753
    %v1755 = vsel %vm1752, %v1754, %v1750
    %v1756 = vmul.f32 1.0, %v1755
    %v1757 = vrcp.pop %v1691
    %v1758 = vmul.f32 %v1691, %v1757
    %v1759 = vsub.f32 1.0, %v1758
    %v1760 = vmul.f32 %v1757, %v1759
    %v1761 = vadd.f32 %v1757, %v1760
    %vm1762 = vweird.f32 %v1691
    %vm1763 = vweird.f32 %v1757
    %vm1764 = vmor %vm1762, %vm1763
    %v1765 = vsel %vm1764, %v1757, %v1761
    %v1766 = vand.u32 2147483647, %v1691
    %vm1767 = vcmp.eq.f32.partialorder %v1766, 8.507059e+37
    %v1768 = vand.u32 %v1691, 2147483648
    %v1769 = vor.u32 1.1754944e-38, %v1768
    %v1770 = vsel %vm1767, %v1769, %v1765
    %v1771 = vmul.f32 1.0, %v1770
    %v1772 = vrcp.pop %v1692
    %v1773 = vmul.f32 %v1692, %v1772
    %v1774 = vsub.f32 1.0, %v1773
    %v1775 = vmul.f32 %v1772, %v1774
    %v1776 = vadd.f32 %v1772, %v1775
    %vm1777 = vweird.f32 %v1692
    %vm1778 = vweird.f32 %v1772
    %vm1779 = vmor %vm1777, %vm1778
    %v1780 = vsel %vm1779, %v1772, %v1776
    %v1781 = vand.u32 2147483647, %v1692
    %vm1782 = vcmp.eq.f32.partialorder %v1781, 8.507059e+37
    %v1783 = vand.u32 %v1692, 2147483648
    %v1784 = vor.u32 1.1754944e-38, %v1783
    %v1785 = vsel %vm1782, %v1784, %v1780
    %v1786 = vmul.f32 1.0, %v1785
    %v1787 = vrcp.pop %v1693
    %v1788 = vmul.f32 %v1693, %v1787
    %v1789 = vsub.f32 1.0, %v1788
    %v1790 = vmul.f32 %v1787, %v1789
    %v1791 = vadd.f32 %v1787, %v1790
    %vm1792 = vweird.f32 %v1693
    %vm1793 = vweird.f32 %v1787
    %vm1794 = vmor %vm1792, %vm1793
    %v1795 = vsel %vm1794, %v1787, %v1791
    %v1796 = vand.u32 2147483647, %v1693
    %vm1797 = vcmp.eq.f32.partialorder %v1796, 8.507059e+37
    %v1798 = vand.u32 %v1693, 2147483648
    %v1799 = vor.u32 1.1754944e-38, %v1798
    %v1800 = vsel %vm1797, %v1799, %v1795
    %v1801 = vmul.f32 1.0, %v1800
    %v1802 = vrcp.pop %v1694
    %v1803 = vmul.f32 %v1694, %v1802
    %v1804 = vsub.f32 1.0, %v1803
    %v1805 = vmul.f32 %v1802, %v1804
    %v1806 = vadd.f32 %v1802, %v1805
    %vm1807 = vweird.f32 %v1694
    %vm1808 = vweird.f32 %v1802
    %vm1809 = vmor %vm1807, %vm1808
    %v1810 = vsel %vm1809, %v1802, %v1806
    %v1811 = vand.u32 2147483647, %v1694
    %vm1812 = vcmp.eq.f32.partialorder %v1811, 8.507059e+37
    %v1813 = vand.u32 %v1694, 2147483648
    %v1814 = vor.u32 1.1754944e-38, %v1813
    %v1815 = vsel %vm1812, %v1814, %v1810
    %v1816 = vmul.f32 1.0, %v1815
    %v1817 = vrcp.pop %v1695
    %v1818 = vmul.f32 %v1695, %v1817
    %v1819 = vsub.f32 1.0, %v1818
    %v1820 = vmul.f32 %v1817, %v1819
    %v1821 = vadd.f32 %v1817, %v1820
    %vm1822 = vweird.f32 %v1695
    %vm1823 = vweird.f32 %v1817
    %vm1824 = vmor %vm1822, %vm1823
    %v1825 = vsel %vm1824, %v1817, %v1821
    %v1826 = vand.u32 2147483647, %v1695
    %vm1827 = vcmp.eq.f32.partialorder %v1826, 8.507059e+37
    %v1828 = vand.u32 %v1695, 2147483648
    %v1829 = vor.u32 1.1754944e-38, %v1828
    %v1830 = vsel %vm1827, %v1829, %v1825
    %v1831 = vmul.f32 1.0, %v1830
    %v1832 = vrcp.pop %v1696
    %v1833 = vmul.f32 %v1696, %v1832
    %v1834 = vsub.f32 1.0, %v1833
    %v1835 = vmul.f32 %v1832, %v1834
    %v1836 = vadd.f32 %v1832, %v1835
    %vm1837 = vweird.f32 %v1696
    %vm1838 = vweird.f32 %v1832
    %vm1839 = vmor %vm1837, %vm1838
    %v1840 = vsel %vm1839, %v1832, %v1836
    %v1841 = vand.u32 2147483647, %v1696
    %vm1842 = vcmp.eq.f32.partialorder %v1841, 8.507059e+37
    %v1843 = vand.u32 %v1696, 2147483648
    %v1844 = vor.u32 1.1754944e-38, %v1843
    %v1845 = vsel %vm1842, %v1844, %v1840
    %v1846 = vmul.f32 1.0, %v1845
    %v1847 = vmul.f32 %v1303, %v1711
    %v1848 = vmul.f32 %v1342, %v1726
    %v1849 = vmul.f32 %v1381, %v1741
    %v1850 = vmul.f32 %v1420, %v1756
    %v1851 = vmul.f32 %v1459, %v1771
    %v1852 = vmul.f32 %v1498, %v1786
    %v1853 = vmul.f32 %v1537, %v1801
    %v1854 = vmul.f32 %v1576, %v1816
    %v1855 = vmul.f32 %v1615, %v1831
    %v1856 = vmul.f32 %v1654, %v1846
    %v1857 = vpack.c.bf16 %v1848, %v1847
    %v1858 = vpack.c.bf16 %v1850, %v1849
    %v1859 = vpack.c.bf16 %v1852, %v1851
    %v1860 = vpack.c.bf16 %v1854, %v1853
    %v1861 = vpack.c.bf16 %v1856, %v1855
    %v1867 = vrot.slane %v1857, 3
    %v1868 = vrot.slane %v1858, 6
    %v1869 = vrot.slane %v1858, 1
    %v1870 = vrot.slane %v1859, 4
    %v1871 = vrot.slane %v1859, 7
    %v1872 = vrot.slane %v1860, 2
    %v1873 = vrot.slane %v1860, 5
    %v1874 = vrot.slane %v1861, 3
    %vm1875 = vcmask 1040384
    %v1878 = vsel %vm1875, %v1857, %v1867
    %vm1879 = vcmask 1042434
    %v1882 = vsel %vm1879, %v1868, %v1869
    %vm1883 = vcmask 1041408
    %v1884 = vsel %vm1883, %v1878, %v1882
    %vm1885 = vcmask 1044484
    %v1888 = vsel %vm1885, %v1870, %v1871
    %vm1889 = vcmask 1046534
    %v1892 = vsel %vm1889, %v1872, %v1873
    %vm1893 = vcmask 1045508
    %v1894 = vsel %vm1893, %v1888, %v1892
    %vm1895 = vcmask 1043456
    %v1896 = vsel %vm1895, %v1884, %v1894
    %v1899 = vsel %vm1875, %v1861, %v1874
    %vm1902 = vcmask 1040384
    %vm1903 = vsmask.f32 256
    %vm1904 = vmand %vm1902, %vm1903
    %vm1905 = vcmask 1041409
    %vm1906 = vsmask.f32 1280
    %vm1907 = vmand %vm1905, %vm1906
    %vm1908 = vmor %vm1907, %vm1904
    %vm1909 = vcmask 1042434
    %vm1910 = vsmask.f32 2304
    %vm1911 = vmand %vm1909, %vm1910
    %vm1912 = vmor %vm1911, %vm1908
    %vm1913 = vcmask 1043459
    %vm1914 = vsmask.f32 3328
    %vm1915 = vmand %vm1913, %vm1914
    %vm1916 = vmor %vm1915, %vm1912
    %vm1917 = vcmask 1044484
    %vm1918 = vsmask.f32 4352
    %vm1919 = vmand %vm1917, %vm1918
    %vm1920 = vmor %vm1919, %vm1916
    %vm1921 = vcmask 1045509
    %vm1922 = vsmask.f32 5376
    %vm1923 = vmand %vm1921, %vm1922
    %vm1924 = vmor %vm1923, %vm1920
    %vm1925 = vcmask 1046534
    %vm1926 = vsmask.f32 6400
    %vm1927 = vmand %vm1925, %vm1926
    %vm1928 = vmor %vm1927, %vm1924
    %vm1929 = vcmask 1047559
    %vm1930 = vsmask.f32 7424
    %vm1931 = vmand %vm1929, %vm1930
    %vm1932 = vmor %vm1931, %vm1928
    %v1933 = vld [vmem:[#allocation5] sm:$0xff]
    %v1934 = vsel %vm1932, %v1896, %v1933
    %1935 = vst [vmem:[#allocation5] sm:$0xff] %v1934
    %v1936 = vld [vmem:[#allocation5 + $0x8] sm:$0x3]
    %v1937 = vsel %vm1908, %v1899, %v1936
    %1938 = vst [vmem:[#allocation5 + $0x8] sm:$0x3] %v1937
    // Predicated region
    $region18: #{linear.1} parent=1 // pred_check
      _
    $region19: #{linear.1} parent=1 // pred_check_branch
      %1940 = sbr.rel (0) target = $region21
    $region20: #{linear.1} parent=1 // pred_region
      %1942 = vsyncadd [#allocation4], 0
      %s1944 = sshll.u32 [#allocation5], 4
      %s1945 = int_to_ptr.vmem [resolvable:$true] %s1944
      %s1946 = sshll.u32 %s3, 4
      %s1947 = int_to_ptr.hbm [resolvable:$true] %s1946
      %1949 = dma.vmem_to_hbm [thread:$0]  %s1945, 160, %s1947, [#allocation4]
    $region21: #{linear.1} parent=1 // pred_fallthru
      _
    // Predicated region
    $region22: #{linear.1} parent=1 // pred_check
      _
    $region23: #{linear.1} parent=1 // pred_check_branch
      %1951 = sbr.rel (0) target = $region25
    $region24: #{linear.1} parent=1 // pred_region
      %1953 = dma.done [#allocation4], 160
    $region25: #{linear.1} parent=1 // pred_fallthru
      _
    %1954 = vsyncpa [#allocation3], 1
    %1955 = vsyncpa [#allocation4], 1

</llo_original>
